<compile_context>
chip_gen: v5e
topology: v5e:2x2
jax: 0.10.0
libtpu: 0.0.40
codegen_flags: <defaults>
</compile_context>

<pallas_src>
import jax
import jax.numpy as jnp
import numpy as np
from jax.experimental import pallas as pl
from jax.experimental.pallas import tpu as pltpu

PREC = jax.lax.Precision.HIGHEST          # used for the f32-exact path and the tiny MLP head
_MASK_VALUE = -1e9                        # same constant as the torch masked_fill


def _maybe_single_buffered_spec(shape, index_map, enable):
    """BlockSpec for a grid-constant operand; single-buffer it when the API allows."""
    if enable and hasattr(pl, "Buffered"):
        try:
            return pl.BlockSpec(shape, index_map, pipeline_mode=pl.Buffered(1))
        except Exception:
            pass
    return pl.BlockSpec(shape, index_map)


def _make_abmil_kernel(*, n_cells, n_chunks, ragged, compute_dtype, mm_precision):
    """Build the kernel closure. One grid step = (Bb bags) x (one chunk of Nt cells)."""
    single = (n_chunks == 1)

    def head(pooled, w1_ref, b1_ref, w2_ref, b2_ref, w3_ref, b3_ref):
        # Tiny MLP head: keep in f32 / HIGHEST (negligible flops, preserves accuracy).
        h = jnp.dot(pooled, w1_ref[...], precision=PREC,
                    preferred_element_type=jnp.float32) + b1_ref[...]
        h = jnp.maximum(h, 0.0)
        h = jnp.dot(h, w2_ref[...], precision=PREC,
                    preferred_element_type=jnp.float32) + b2_ref[...]
        h = jnp.maximum(h, 0.0)
        return jnp.dot(h, w3_ref[...], precision=PREC,
                       preferred_element_type=jnp.float32) + b3_ref[...]

    def kernel(x_ref, mask_ref, wvu_ref, bvu_ref, ww_ref, bw_ref,
               w1_ref, b1_ref, w2_ref, b2_ref, w3_ref, b3_ref,
               out_ref, *scratch):
        Bb, Nt, D = x_ref.shape
        m_lane = wvu_ref.shape[1] // 2
        n_i = pl.program_id(1)

        x = x_ref[...]                                   # (Bb, Nt, D), streamed dtype
        mask = mask_ref[...].reshape(Bb, Nt)             # (Bb, Nt), 1.0 == masked out

        # ---- fused gated-attention projection: one (Bb*Nt, D) @ (D, 2*m_lane) MXU matmul.
        #      bf16 inputs / f32 accumulation by default (mm_precision=DEFAULT); f32 path
        #      uses HIGHEST.  The V/U halves are lane-tile aligned -> free slices.
        xc = x.reshape(Bb * Nt, D).astype(compute_dtype)
        z = jnp.dot(xc, wvu_ref[...], precision=mm_precision,
                    preferred_element_type=jnp.float32) + bvu_ref[...]      # (Bb*Nt, 2*m_lane)
        gate = jnp.tanh(z[:, :m_lane] * jax.nn.sigmoid(z[:, m_lane:]))      # tanh(V*sigmoid(U))
        gate3 = gate.reshape(Bb, Nt, m_lane)

        # ---- attention logits, lane-major (Bb, Nt); padded w columns are zero -> no effect.
        score = jnp.sum(gate3 * ww_ref[...][None, :, :], axis=-1) + bw_ref[...]
        score = jnp.where(mask > 0.5, jnp.float32(_MASK_VALUE), score)

        if ragged:
            # Ragged cell tail / no host padding: out-of-bounds cells get -inf score
            # (=> exactly 0 attention weight) and their (undefined) X is zeroed so the
            # pooling sum cannot pick up garbage.
            cell = n_i * Nt + jax.lax.broadcasted_iota(jnp.int32, (Bb, Nt), 1)
            in_bounds = cell < n_cells
            score = jnp.where(in_bounds, score, -jnp.inf)
            x_pool = jnp.where(in_bounds[:, :, None], x, 0).astype(jnp.float32)
        else:
            x_pool = x.astype(jnp.float32)

        if single:
            # ---- specialized single-chunk path: plain softmax + pool, no streaming state.
            m = jnp.max(score, axis=-1, keepdims=True)                       # (Bb, 1)
            p = jnp.exp(score - m)                                           # (Bb, Nt)
            l = jnp.sum(p, axis=-1, keepdims=True)
            # VPU multiply + sublane reduce (f32) instead of a degenerate (1,Nt)x(Nt,D) matmul.
            pooled = jnp.sum(p[:, :, None] * x_pool, axis=1) / l             # (Bb, D)
            out = head(pooled, w1_ref, b1_ref, w2_ref, b2_ref, w3_ref, b3_ref)
            out_ref[...] = out[None].astype(out_ref.dtype)
        else:
            # ---- streaming (online softmax) path across cell chunks.
            m_ref, l_ref, acc_ref = scratch

            @pl.when(n_i == 0)
            def _():
                m_ref[...] = jnp.full(m_ref.shape, -jnp.inf, m_ref.dtype)
                l_ref[...] = jnp.zeros_like(l_ref)
                acc_ref[...] = jnp.zeros_like(acc_ref)

            m_prev = m_ref[...]
            m_new = jnp.maximum(m_prev, jnp.max(score, axis=-1, keepdims=True))
            alpha = jnp.exp(m_prev - m_new)                                  # 0.0 on first chunk
            p = jnp.exp(score - m_new)                                       # (Bb, Nt)
            l_ref[...] = alpha * l_ref[...] + jnp.sum(p, axis=-1, keepdims=True)
            acc_ref[...] = alpha * acc_ref[...] + jnp.sum(p[:, :, None] * x_pool, axis=1)
            m_ref[...] = m_new

            @pl.when(n_i == pl.num_programs(1) - 1)
            def _():
                pooled = acc_ref[...] / l_ref[...]                           # (Bb, D)
                out = head(pooled, w1_ref, b1_ref, w2_ref, b2_ref, w3_ref, b3_ref)
                out_ref[...] = out[None].astype(out_ref.dtype)

    return kernel


def abmil_forward(X, X_mask, params, *, compute_dtype=jnp.bfloat16, bag_block=8,
                  chunk_budget_bytes=None, single_buffer_weights=True):
    """X: (B, N, D); X_mask: (B, N) bool (True = masked out). Returns (B, M) f32.

    compute_dtype controls only the big projection matmul (bf16 default); softmax state,
    pooling and the MLP head stay in f32.  For the exact f32 (PyTorch-matching) path pass
    compute_dtype=jnp.float32.  If the upstream producer can emit bf16 X, pass it directly:
    the kernel streams X in its given dtype (halving the dominant HBM->VMEM DMA).
    """
    # TODO(synk): the return_attn=True path (exporting the per-cell attention map) is not emitted.
    B, N, D = X.shape
    M = params["wv"].shape[1]
    M_lane = ((M + 127) // 128) * 128                 # lane-tile aligned half width
    cdt = jnp.dtype(compute_dtype)
    f32_exact = (cdt == jnp.dtype(jnp.float32))
    mm_prec = PREC if f32_exact else jax.lax.Precision.DEFAULT

    # ---- pack [V | pad | U | pad] so the in-kernel split is lane-aligned (padded columns
    #      have zero weight/bias/w -> contribute exactly 0).  Projection weight in compute dtype.
    wvu = jnp.zeros((D, 2 * M_lane), cdt)
    wvu = wvu.at[:, :M].set(params["wv"].astype(cdt))
    wvu = wvu.at[:, M_lane:M_lane + M].set(params["wu"].astype(cdt))
    bvu = jnp.zeros((1, 2 * M_lane), jnp.float32)
    bvu = bvu.at[:, :M].set(params["bv"].astype(jnp.float32))
    bvu = bvu.at[:, M_lane:M_lane + M].set(params["bu"].astype(jnp.float32))
    ww_row = jnp.zeros((1, M_lane), jnp.float32).at[:, :M].set(
        params["ww"].reshape(1, M).astype(jnp.float32))
    bw = params["bw"].reshape(1, 1).astype(jnp.float32)
    w1 = params["w1"].astype(jnp.float32); b1 = params["b1"].reshape(1, M).astype(jnp.float32)
    w2 = params["w2"].astype(jnp.float32); b2 = params["b2"].reshape(1, M).astype(jnp.float32)
    w3 = params["w3"].astype(jnp.float32); b3 = params["b3"].reshape(1, M).astype(jnp.float32)

    # Mask as (B, 1, N) f32 (1.0 == masked out): tiny copy; X itself is NOT copied or padded.
    mask3 = X_mask.astype(jnp.float32).reshape(B, 1, N)

    # ---- generation-aware sizing.
    vmem_cap = 64 << 20
    try:
        v = getattr(pltpu.get_tpu_info(), "vmem_capacity_bytes", None)
        if v:
            vmem_cap = int(v)
    except Exception:
        pass
    n_tc = 1
    try:
        n_tc = max(1, int(getattr(jax.devices()[0], "num_cores", 1) or 1))
    except Exception:
        pass

    # Batch block: as many bags per step as possible (sublane density), but keep the
    # "parallel" batch grid axis wide enough to feed all TensorCores on multi-core chips.
    Bb = max(1, min(int(bag_block), B))
    if n_tc > 1 and B >= n_tc:
        Bb = max(1, min(Bb, -(-B // n_tc)))

    x_bytes = X.dtype.itemsize
    weight_bytes = int(sum(int(a.size) * a.dtype.itemsize
                           for a in (wvu, bvu, ww_row, bw, w1, b1, w2, b2, w3, b3)))

    def _per_cell_bytes(bb):
        # double-buffered X block + f32 pooling copies/products + z/gate intermediates
        return bb * (2 * x_bytes * D + 12 * D + 16 * M_lane + 64)

    if chunk_budget_bytes is None:
        stream_budget = int(0.8 * vmem_cap) - 2 * weight_bytes - (4 << 20)
    else:
        stream_budget = int(chunk_budget_bytes)
    stream_budget = max(stream_budget, 1 << 20)

    if _per_cell_bytes(Bb) * N <= stream_budget:
        Nt = N                                              # single chunk, whole bag resident
    else:
        Nt = max(128, (stream_budget // _per_cell_bytes(Bb)) // 128 * 128)
        # Very large D: shrink the batch block jointly with the chunk so even the minimal
        # 128-cell chunk fits the per-generation VMEM budget (v7x 64 MiB safety).
        while Bb > 1 and _per_cell_bytes(Bb) * Nt > stream_budget:
            Bb = max(1, Bb // 2)
            Nt = max(128, (stream_budget // _per_cell_bytes(Bb)) // 128 * 128)

    B_grid = -(-B // Bb)
    n_chunks = -(-N // Nt)
    ragged = (N % Nt) != 0
    grid = (B_grid, n_chunks)

    vmem_limit = int(max(32 << 20, min(int(0.85 * vmem_cap), 112 << 20)))

    # Advisory cost estimate so XLA schedules surrounding ops sensibly.
    B_eff, N_eff = B_grid * Bb, n_chunks * Nt
    flops = (2 * B_eff * N_eff * D * (2 * M_lane)     # fused V|U projection
             + 2 * B_eff * N_eff * M_lane             # attention logits
             + 2 * B_eff * N_eff * D                  # attention-weighted pooling
             + 2 * B_eff * (D * M + 2 * M * M))       # MLP head
    transcendentals = B_eff * N_eff * (2 * M_lane + 1)
    bytes_accessed = (int(X.size) * x_bytes + B * N * 4 + weight_bytes + 4 * B * M)
    cost = pl.CostEstimate(flops=flops, transcendentals=transcendentals,
                           bytes_accessed=bytes_accessed)

    kernel = _make_abmil_kernel(n_cells=N, n_chunks=n_chunks, ragged=ragged,
                                compute_dtype=cdt, mm_precision=mm_prec)

    def _x_map(b, n): return (b, n, 0)
    def _mask_map(b, n): return (b, 0, n)
    def _out_map(b, n): return (b, 0, 0)
    def _w_map(b, n): return (0, 0)

    def run(single_buffer):
        def wspec(arr):
            return _maybe_single_buffered_spec(arr.shape, _w_map, single_buffer)

        in_specs = [
            pl.BlockSpec((Bb, Nt, D), _x_map),            # X block (streamed, no host copy)
            pl.BlockSpec((Bb, 1, Nt), _mask_map),         # mask block (lane-major)
            wspec(wvu), wspec(bvu), wspec(ww_row), wspec(bw),
            wspec(w1), wspec(b1), wspec(w2), wspec(b2), wspec(w3), wspec(b3),
        ]
        # Output (B_grid, Bb, M): lane+sublane-dense full blocks for any Bb.
        out_specs = pl.BlockSpec((1, Bb, M), _out_map)
        scratch = [] if n_chunks == 1 else [
            pltpu.VMEM((Bb, 1), jnp.float32),             # running max m (online softmax)
            pltpu.VMEM((Bb, 1), jnp.float32),             # running sum l
            pltpu.VMEM((Bb, D), jnp.float32),             # running attention-weighted sum of X
        ]
        return pl.pallas_call(
            kernel,
            out_shape=jax.ShapeDtypeStruct((B_grid, Bb, M), jnp.float32),
            grid_spec=pltpu.PrefetchScalarGridSpec(
                num_scalar_prefetch=0,
                grid=grid,
                in_specs=in_specs,
                out_specs=out_specs,
                scratch_shapes=scratch,
            ),
            compiler_params=pltpu.CompilerParams(
                # bags are independent -> "parallel"; the cell-chunk axis carries the
                # online-softmax state -> "arbitrary".
                dimension_semantics=("parallel", "arbitrary"),
                vmem_limit_bytes=vmem_limit,
            ),
            cost_estimate=cost,
        )(X, mask3, wvu, bvu, ww_row, bw, w1, b1, w2, b2, w3, b3)

    if single_buffer_weights:
        try:
            out = run(True)
        except Exception:
            out = run(False)       # fall back to default double-buffered weight blocks
    else:
        out = run(False)
    return out.reshape(B_grid * Bb, M)[:B]


def abmil_reference(X, X_mask, params):
    """Pure-JAX f32 reference mirroring the PyTorch forward (for verification)."""
    vx = jnp.einsum('bnd,dm->bnm', X, params["wv"], precision=PREC) + params["bv"]
    ux = jnp.einsum('bnd,dm->bnm', X, params["wu"], precision=PREC) + params["bu"]
    gate = jnp.tanh(vx * jax.nn.sigmoid(ux))
    score = jnp.einsum('bnm,mk->bnk', gate, params["ww"], precision=PREC) + params["bw"]
    score = jnp.where(X_mask[..., None], _MASK_VALUE, score)
    attn = jax.nn.softmax(score, axis=1)
    pooled = jnp.sum(attn * X, axis=1)
    h = jnp.maximum(jnp.dot(pooled, params["w1"], precision=PREC) + params["b1"], 0.0)
    h = jnp.maximum(jnp.dot(h, params["w2"], precision=PREC) + params["b2"], 0.0)
    return jnp.dot(h, params["w3"], precision=PREC) + params["b3"]


def init_params(key, input_dim, model_dim):
    ks = jax.random.split(key, 12)
    s = 0.1
    # PyTorch nn.Linear stores weight as (out, in); here we keep them pre-transposed (in, out).
    return {
        "wv": s * jax.random.normal(ks[0], (input_dim, model_dim), jnp.float32),
        "bv": s * jax.random.normal(ks[1], (1, model_dim), jnp.float32),
        "wu": s * jax.random.normal(ks[2], (input_dim, model_dim), jnp.float32),
        "bu": s * jax.random.normal(ks[3], (1, model_dim), jnp.float32),
        "ww": s * jax.random.normal(ks[4], (model_dim, 1), jnp.float32),
        "bw": s * jax.random.normal(ks[5], (1, 1), jnp.float32),
        "w1": s * jax.random.normal(ks[6], (input_dim, model_dim), jnp.float32),
        "b1": s * jax.random.normal(ks[7], (1, model_dim), jnp.float32),
        "w2": s * jax.random.normal(ks[8], (model_dim, model_dim), jnp.float32),
        "b2": s * jax.random.normal(ks[9], (1, model_dim), jnp.float32),
        "w3": s * jax.random.normal(ks[10], (model_dim, model_dim), jnp.float32),
        "b3": s * jax.random.normal(ks[11], (1, model_dim), jnp.float32),
    }


if __name__ == "__main__":
    # ---- primary small-shape test (single chunk) ----
    B, N, D_in, M = 2, 8, 32, 32          # batch, num_cells, input_dim, model_dim (num_layers=2)
    key = jax.random.PRNGKey(0)
    kx, kp = jax.random.split(key, 2)
    X = jax.random.normal(kx, (B, N, D_in), jnp.float32)
    X_mask = jnp.zeros((B, N), jnp.bool_).at[1, N - 3:].set(True)   # True = masked out
    params = init_params(kp, D_in, M)
    ref = abmil_reference(X, X_mask, params)

    # default bf16-MXU path (loose tolerance vs the f32 reference)
    out_bf16 = jax.block_until_ready(abmil_forward(X, X_mask, params))
    np.testing.assert_allclose(np.asarray(out_bf16), np.asarray(ref), rtol=3e-2, atol=3e-2)

    # exact f32 path (matches the PyTorch/f32 reference tightly)
    out_f32 = jax.block_until_ready(
        abmil_forward(X, X_mask, params, compute_dtype=jnp.float32))
    np.testing.assert_allclose(np.asarray(out_f32), np.asarray(ref), rtol=1e-5, atol=1e-5)

    # ---- streaming path test: multi-chunk online softmax, ragged cell tail, partial
    #      batch block (forced via a small chunk budget), still at modest sizes ----
    B2, N2, D2, M2 = 10, 600, 64, 48
    k1, k2, k3 = jax.random.split(jax.random.PRNGKey(1), 3)
    X2 = jax.random.normal(k1, (B2, N2, D2), jnp.float32)
    X2_mask = jax.random.bernoulli(k2, 0.2, (B2, N2))
    params2 = init_params(k3, D2, M2)
    ref2 = abmil_reference(X2, X2_mask, params2)
    out2 = jax.block_until_ready(
        abmil_forward(X2, X2_mask, params2, compute_dtype=jnp.float32,
                      bag_block=4, chunk_budget_bytes=2 * 1024 * 1024))
    np.testing.assert_allclose(np.asarray(out2), np.asarray(ref2), rtol=1e-4, atol=1e-4)

    print("KERNEL_OK")
</pallas_src>

<mosaic_0001>
module attributes {stable_mosaic.version = 11 : i64} {
  func.func @kernel(%arg0: i32, %arg1: i32, %arg2: memref<2x8x32xf32, #tpu.memory_space<vmem>>, %arg3: memref<2x1x8xf32, #tpu.memory_space<vmem>>, %arg4: memref<32x256xbf16, #tpu.memory_space<vmem>>, %arg5: memref<1x256xf32, #tpu.memory_space<vmem>>, %arg6: memref<1x128xf32, #tpu.memory_space<vmem>>, %arg7: memref<1x1xf32, #tpu.memory_space<vmem>>, %arg8: memref<32x32xf32, #tpu.memory_space<vmem>>, %arg9: memref<1x32xf32, #tpu.memory_space<vmem>>, %arg10: memref<32x32xf32, #tpu.memory_space<vmem>>, %arg11: memref<1x32xf32, #tpu.memory_space<vmem>>, %arg12: memref<32x32xf32, #tpu.memory_space<vmem>>, %arg13: memref<1x32xf32, #tpu.memory_space<vmem>>, %arg14: memref<1x2x32xf32, #tpu.memory_space<vmem>>) attributes {dimension_semantics = [#tpu.dimension_semantics<parallel>, #tpu.dimension_semantics<arbitrary>], iteration_bounds = array<i64: 1, 1>, scalar_prefetch = 0 : i64, scratch_operands = 0 : i64, tpu.core_type = #tpu.core_type<tc>, window_params = [{transform_indices = @transform_0, window_bounds = array<i64: 2, 8, 32>}, {transform_indices = @transform_1, window_bounds = array<i64: 2, 1, 8>}, {pipeline_mode = #tpu.pipeline_mode<synchronous>, transform_indices = @transform_2, window_bounds = array<i64: 32, 256>}, {pipeline_mode = #tpu.pipeline_mode<synchronous>, transform_indices = @transform_3, window_bounds = array<i64: 1, 256>}, {pipeline_mode = #tpu.pipeline_mode<synchronous>, transform_indices = @transform_4, window_bounds = array<i64: 1, 128>}, {pipeline_mode = #tpu.pipeline_mode<synchronous>, transform_indices = @transform_5, window_bounds = array<i64: 1, 1>}, {pipeline_mode = #tpu.pipeline_mode<synchronous>, transform_indices = @transform_6, window_bounds = array<i64: 32, 32>}, {pipeline_mode = #tpu.pipeline_mode<synchronous>, transform_indices = @transform_7, window_bounds = array<i64: 1, 32>}, {pipeline_mode = #tpu.pipeline_mode<synchronous>, transform_indices = @transform_8, window_bounds = array<i64: 32, 32>}, {pipeline_mode = #tpu.pipeline_mode<synchronous>, transform_indices = @transform_9, window_bounds = array<i64: 1, 32>}, {pipeline_mode = #tpu.pipeline_mode<synchronous>, transform_indices = @transform_10, window_bounds = array<i64: 32, 32>}, {pipeline_mode = #tpu.pipeline_mode<synchronous>, transform_indices = @transform_11, window_bounds = array<i64: 1, 32>}, {transform_indices = @transform_12, window_bounds = array<i64: 1, 2, 32>}]} {
    %c0 = arith.constant 0 : index
    %c0_0 = arith.constant 0 : index
    %c0_1 = arith.constant 0 : index
    %0 = vector.load %arg2[%c0, %c0_0, %c0_1] : memref<2x8x32xf32, #tpu.memory_space<vmem>>, vector<2x8x32xf32>
    %c0_2 = arith.constant 0 : index
    %c0_3 = arith.constant 0 : index
    %c0_4 = arith.constant 0 : index
    %1 = vector.load %arg3[%c0_2, %c0_3, %c0_4] : memref<2x1x8xf32, #tpu.memory_space<vmem>>, vector<2x1x8xf32>
    %2 = vector.shape_cast %1 : vector<2x1x8xf32> to vector<2x8xf32>
    %3 = vector.shape_cast %0 : vector<2x8x32xf32> to vector<16x32xf32>
    %4 = arith.truncf %3 : vector<16x32xf32> to vector<16x32xbf16>
    %c0_5 = arith.constant 0 : index
    %c0_6 = arith.constant 0 : index
    %5 = vector.load %arg4[%c0_5, %c0_6] : memref<32x256xbf16, #tpu.memory_space<vmem>>, vector<32x256xbf16>
    %cst = arith.constant dense<0.000000e+00> : vector<16x256xf32>
    %6 = tpu.matmul %4, %5, %cst {dimension_numbers = #tpu.dot_dimension_numbers<[1], [0], [0], [1], [0, 0, 1, 1], [], []>} : vector<16x32xbf16>, vector<32x256xbf16>, vector<16x256xf32> -> vector<16x256xf32>
    %c0_7 = arith.constant 0 : index
    %c0_8 = arith.constant 0 : index
    %7 = vector.load %arg5[%c0_7, %c0_8] : memref<1x256xf32, #tpu.memory_space<vmem>>, vector<1x256xf32>
    %8 = vector.broadcast %7 : vector<1x256xf32> to vector<16x256xf32>
    %9 = arith.addf %6, %8 : vector<16x256xf32>
    %10 = vector.extract_strided_slice %9 {offsets = [0, 0], sizes = [16, 128], strides = [1, 1]} : vector<16x256xf32> to vector<16x128xf32>
    %11 = vector.extract_strided_slice %9 {offsets = [0, 128], sizes = [16, 128], strides = [1, 1]} : vector<16x256xf32> to vector<16x128xf32>
    %12 = arith.negf %11 : vector<16x128xf32>
    %13 = math.exp %12 : vector<16x128xf32>
    %cst_9 = arith.constant 1.000000e+00 : f32
    %14 = vector.broadcast %cst_9 : f32 to vector<16x128xf32>
    %15 = arith.addf %14, %13 : vector<16x128xf32>
    %16 = arith.divf %14, %15 : vector<16x128xf32>
    %17 = arith.mulf %10, %16 : vector<16x128xf32>
    %18 = math.tanh %17 : vector<16x128xf32>
    %19 = vector.shape_cast %18 : vector<16x128xf32> to vector<2x8x128xf32>
    %c0_10 = arith.constant 0 : index
    %c0_11 = arith.constant 0 : index
    %20 = vector.load %arg6[%c0_10, %c0_11] : memref<1x128xf32, #tpu.memory_space<vmem>>, vector<1x128xf32>
    %21 = vector.shape_cast %20 : vector<1x128xf32> to vector<1x1x128xf32>
    %22 = vector.broadcast %21 : vector<1x1x128xf32> to vector<2x8x128xf32>
    %23 = arith.mulf %19, %22 : vector<2x8x128xf32>
    %cst_12 = arith.constant dense<0.000000e+00> : vector<2x8xf32>
    %24 = vector.multi_reduction <add>, %23, %cst_12 [2] : vector<2x8x128xf32> to vector<2x8xf32>
    %c0_13 = arith.constant 0 : index
    %c0_14 = arith.constant 0 : index
    %25 = vector.load %arg7[%c0_13, %c0_14] : memref<1x1xf32, #tpu.memory_space<vmem>>, vector<1x1xf32>
    %26 = vector.broadcast %25 : vector<1x1xf32> to vector<2x8xf32>
    %27 = arith.addf %24, %26 : vector<2x8xf32>
    %cst_15 = arith.constant 5.000000e-01 : f32
    %28 = vector.broadcast %cst_15 : f32 to vector<2x8xf32>
    %29 = arith.cmpf ogt, %2, %28 : vector<2x8xf32>
    %cst_16 = arith.constant -1.000000e+09 : f32
    %30 = vector.broadcast %cst_16 : f32 to vector<2x8xf32>
    %31 = arith.select %29, %30, %27 : vector<2x8xi1>, vector<2x8xf32>
    %cst_17 = arith.constant dense<0xFF800000> : vector<2xf32>
    %32 = vector.multi_reduction <maximumf>, %31, %cst_17 [1] : vector<2x8xf32> to vector<2xf32>
    %33 = vector.shape_cast %32 : vector<2xf32> to vector<2x1xf32>
    %34 = vector.broadcast %33 : vector<2x1xf32> to vector<2x8xf32>
    %35 = arith.subf %31, %34 : vector<2x8xf32>
    %36 = math.exp %35 : vector<2x8xf32>
    %cst_18 = arith.constant dense<0.000000e+00> : vector<2xf32>
    %37 = vector.multi_reduction <add>, %36, %cst_18 [1] : vector<2x8xf32> to vector<2xf32>
    %38 = vector.shape_cast %37 : vector<2xf32> to vector<2x1xf32>
    %39 = vector.shape_cast %36 : vector<2x8xf32> to vector<2x8x1xf32>
    %40 = vector.broadcast %39 : vector<2x8x1xf32> to vector<2x8x32xf32>
    %41 = arith.mulf %40, %0 : vector<2x8x32xf32>
    %cst_19 = arith.constant dense<0.000000e+00> : vector<2x32xf32>
    %42 = vector.multi_reduction <add>, %41, %cst_19 [1] : vector<2x8x32xf32> to vector<2x32xf32>
    %43 = vector.broadcast %38 : vector<2x1xf32> to vector<2x32xf32>
    %44 = arith.divf %42, %43 : vector<2x32xf32>
    %c0_20 = arith.constant 0 : index
    %c0_21 = arith.constant 0 : index
    %45 = vector.load %arg8[%c0_20, %c0_21] : memref<32x32xf32, #tpu.memory_space<vmem>>, vector<32x32xf32>
    %cst_22 = arith.constant dense<0.000000e+00> : vector<2x32xf32>
    %46 = tpu.matmul %44, %45, %cst_22 {dimension_numbers = #tpu.dot_dimension_numbers<[1], [0], [0], [1], [0, 0, 1, 1], [], []>, precision = #tpu.contract_precision<fp32>} : vector<2x32xf32>, vector<32x32xf32>, vector<2x32xf32> -> vector<2x32xf32>
    %c0_23 = arith.constant 0 : index
    %c0_24 = arith.constant 0 : index
    %47 = vector.load %arg9[%c0_23, %c0_24] : memref<1x32xf32, #tpu.memory_space<vmem>>, vector<1x32xf32>
    %48 = vector.broadcast %47 : vector<1x32xf32> to vector<2x32xf32>
    %49 = arith.addf %46, %48 : vector<2x32xf32>
    %cst_25 = arith.constant 0.000000e+00 : f32
    %50 = vector.broadcast %cst_25 : f32 to vector<2x32xf32>
    %51 = arith.maximumf %49, %50 : vector<2x32xf32>
    %c0_26 = arith.constant 0 : index
    %c0_27 = arith.constant 0 : index
    %52 = vector.load %arg10[%c0_26, %c0_27] : memref<32x32xf32, #tpu.memory_space<vmem>>, vector<32x32xf32>
    %cst_28 = arith.constant dense<0.000000e+00> : vector<2x32xf32>
    %53 = tpu.matmul %51, %52, %cst_28 {dimension_numbers = #tpu.dot_dimension_numbers<[1], [0], [0], [1], [0, 0, 1, 1], [], []>, precision = #tpu.contract_precision<fp32>} : vector<2x32xf32>, vector<32x32xf32>, vector<2x32xf32> -> vector<2x32xf32>
    %c0_29 = arith.constant 0 : index
    %c0_30 = arith.constant 0 : index
    %54 = vector.load %arg11[%c0_29, %c0_30] : memref<1x32xf32, #tpu.memory_space<vmem>>, vector<1x32xf32>
    %55 = vector.broadcast %54 : vector<1x32xf32> to vector<2x32xf32>
    %56 = arith.addf %53, %55 : vector<2x32xf32>
    %cst_31 = arith.constant 0.000000e+00 : f32
    %57 = vector.broadcast %cst_31 : f32 to vector<2x32xf32>
    %58 = arith.maximumf %56, %57 : vector<2x32xf32>
    %c0_32 = arith.constant 0 : index
    %c0_33 = arith.constant 0 : index
    %59 = vector.load %arg12[%c0_32, %c0_33] : memref<32x32xf32, #tpu.memory_space<vmem>>, vector<32x32xf32>
    %cst_34 = arith.constant dense<0.000000e+00> : vector<2x32xf32>
    %60 = tpu.matmul %58, %59, %cst_34 {dimension_numbers = #tpu.dot_dimension_numbers<[1], [0], [0], [1], [0, 0, 1, 1], [], []>, precision = #tpu.contract_precision<fp32>} : vector<2x32xf32>, vector<32x32xf32>, vector<2x32xf32> -> vector<2x32xf32>
    %c0_35 = arith.constant 0 : index
    %c0_36 = arith.constant 0 : index
    %61 = vector.load %arg13[%c0_35, %c0_36] : memref<1x32xf32, #tpu.memory_space<vmem>>, vector<1x32xf32>
    %62 = vector.broadcast %61 : vector<1x32xf32> to vector<2x32xf32>
    %63 = arith.addf %60, %62 : vector<2x32xf32>
    %64 = vector.shape_cast %63 : vector<2x32xf32> to vector<1x2x32xf32>
    %c0_37 = arith.constant 0 : index
    %c0_38 = arith.constant 0 : index
    %c0_39 = arith.constant 0 : index
    %65 = vector.load %arg14[%c0_37, %c0_38, %c0_39] : memref<1x2x32xf32, #tpu.memory_space<vmem>>, vector<1x2x32xf32>
    tpu.vector_store %arg14[%c0_37, %c0_38, %c0_39], %64 {strides = array<i32>} : memref<1x2x32xf32, #tpu.memory_space<vmem>>, vector<1x2x32xf32>,
    return
  }
  func.func @transform_0(%arg0: i32, %arg1: i32) -> (i32, i32, i32) {
    %c0_i32 = arith.constant 0 : i32
    %c0_i32_0 = arith.constant 0 : i32
    return %arg0, %arg1, %c0_i32 : i32, i32, i32
  }
  func.func @transform_1(%arg0: i32, %arg1: i32) -> (i32, i32, i32) {
    %c0_i32 = arith.constant 0 : i32
    %c0_i32_0 = arith.constant 0 : i32
    return %arg0, %c0_i32, %arg1 : i32, i32, i32
  }
  func.func @transform_2(%arg0: i32, %arg1: i32) -> (i32, i32) {
    %c0_i32 = arith.constant 0 : i32
    %c0_i32_0 = arith.constant 0 : i32
    %c0_i32_1 = arith.constant 0 : i32
    return %c0_i32, %c0_i32_0 : i32, i32
  }
  func.func @transform_3(%arg0: i32, %arg1: i32) -> (i32, i32) {
    %c0_i32 = arith.constant 0 : i32
    %c0_i32_0 = arith.constant 0 : i32
    %c0_i32_1 = arith.constant 0 : i32
    return %c0_i32, %c0_i32_0 : i32, i32
  }
  func.func @transform_4(%arg0: i32, %arg1: i32) -> (i32, i32) {
    %c0_i32 = arith.constant 0 : i32
    %c0_i32_0 = arith.constant 0 : i32
    %c0_i32_1 = arith.constant 0 : i32
    return %c0_i32, %c0_i32_0 : i32, i32
  }
  func.func @transform_5(%arg0: i32, %arg1: i32) -> (i32, i32) {
    %c0_i32 = arith.constant 0 : i32
    %c0_i32_0 = arith.constant 0 : i32
    %c0_i32_1 = arith.constant 0 : i32
    return %c0_i32, %c0_i32_0 : i32, i32
  }
  func.func @transform_6(%arg0: i32, %arg1: i32) -> (i32, i32) {
    %c0_i32 = arith.constant 0 : i32
    %c0_i32_0 = arith.constant 0 : i32
    %c0_i32_1 = arith.constant 0 : i32
    return %c0_i32, %c0_i32_0 : i32, i32
  }
  func.func @transform_7(%arg0: i32, %arg1: i32) -> (i32, i32) {
    %c0_i32 = arith.constant 0 : i32
    %c0_i32_0 = arith.constant 0 : i32
    %c0_i32_1 = arith.constant 0 : i32
    return %c0_i32, %c0_i32_0 : i32, i32
  }
  func.func @transform_8(%arg0: i32, %arg1: i32) -> (i32, i32) {
    %c0_i32 = arith.constant 0 : i32
    %c0_i32_0 = arith.constant 0 : i32
    %c0_i32_1 = arith.constant 0 : i32
    return %c0_i32, %c0_i32_0 : i32, i32
  }
  func.func @transform_9(%arg0: i32, %arg1: i32) -> (i32, i32) {
    %c0_i32 = arith.constant 0 : i32
    %c0_i32_0 = arith.constant 0 : i32
    %c0_i32_1 = arith.constant 0 : i32
    return %c0_i32, %c0_i32_0 : i32, i32
  }
  func.func @transform_10(%arg0: i32, %arg1: i32) -> (i32, i32) {
    %c0_i32 = arith.constant 0 : i32
    %c0_i32_0 = arith.constant 0 : i32
    %c0_i32_1 = arith.constant 0 : i32
    return %c0_i32, %c0_i32_0 : i32, i32
  }
  func.func @transform_11(%arg0: i32, %arg1: i32) -> (i32, i32) {
    %c0_i32 = arith.constant 0 : i32
    %c0_i32_0 = arith.constant 0 : i32
    %c0_i32_1 = arith.constant 0 : i32
    return %c0_i32, %c0_i32_0 : i32, i32
  }
  func.func @transform_12(%arg0: i32, %arg1: i32) -> (i32, i32, i32) {
    %c0_i32 = arith.constant 0 : i32
    %c0_i32_0 = arith.constant 0 : i32
    %c0_i32_1 = arith.constant 0 : i32
    return %arg0, %c0_i32, %c0_i32_0 : i32, i32, i32
  }
}

module attributes {stable_mosaic.version = 11 : i64} {
  func.func @kernel(%arg0: i32, %arg1: i32, %arg2: memref<2x8x32xf32, #tpu.memory_space<vmem>>, %arg3: memref<2x1x8xf32, #tpu.memory_space<vmem>>, %arg4: memref<32x256xbf16, #tpu.memory_space<vmem>>, %arg5: memref<1x256xf32, #tpu.memory_space<vmem>>, %arg6: memref<1x128xf32, #tpu.memory_space<vmem>>, %arg7: memref<1x1xf32, #tpu.memory_space<vmem>>, %arg8: memref<32x32xf32, #tpu.memory_space<vmem>>, %arg9: memref<1x32xf32, #tpu.memory_space<vmem>>, %arg10: memref<32x32xf32, #tpu.memory_space<vmem>>, %arg11: memref<1x32xf32, #tpu.memory_space<vmem>>, %arg12: memref<32x32xf32, #tpu.memory_space<vmem>>, %arg13: memref<1x32xf32, #tpu.memory_space<vmem>>, %arg14: memref<1x2x32xf32, #tpu.memory_space<vmem>>) attributes {dimension_semantics = [#tpu.dimension_semantics<parallel>, #tpu.dimension_semantics<arbitrary>], iteration_bounds = array<i64: 1, 1>, scalar_prefetch = 0 : i64, scratch_operands = 0 : i64, tpu.core_type = #tpu.core_type<tc>, window_params = [{transform_indices = @transform_0, window_bounds = array<i64: 2, 8, 32>}, {transform_indices = @transform_1, window_bounds = array<i64: 2, 1, 8>}, {pipeline_mode = #tpu.pipeline_mode<synchronous>, transform_indices = @transform_2, window_bounds = array<i64: 32, 256>}, {pipeline_mode = #tpu.pipeline_mode<synchronous>, transform_indices = @transform_3, window_bounds = array<i64: 1, 256>}, {pipeline_mode = #tpu.pipeline_mode<synchronous>, transform_indices = @transform_4, window_bounds = array<i64: 1, 128>}, {pipeline_mode = #tpu.pipeline_mode<synchronous>, transform_indices = @transform_5, window_bounds = array<i64: 1, 1>}, {pipeline_mode = #tpu.pipeline_mode<synchronous>, transform_indices = @transform_6, window_bounds = array<i64: 32, 32>}, {pipeline_mode = #tpu.pipeline_mode<synchronous>, transform_indices = @transform_7, window_bounds = array<i64: 1, 32>}, {pipeline_mode = #tpu.pipeline_mode<synchronous>, transform_indices = @transform_8, window_bounds = array<i64: 32, 32>}, {pipeline_mode = #tpu.pipeline_mode<synchronous>, transform_indices = @transform_9, window_bounds = array<i64: 1, 32>}, {pipeline_mode = #tpu.pipeline_mode<synchronous>, transform_indices = @transform_10, window_bounds = array<i64: 32, 32>}, {pipeline_mode = #tpu.pipeline_mode<synchronous>, transform_indices = @transform_11, window_bounds = array<i64: 1, 32>}, {transform_indices = @transform_12, window_bounds = array<i64: 1, 2, 32>}]} {
    %c0 = arith.constant 0 : index
    %c0_0 = arith.constant 0 : index
    %c0_1 = arith.constant 0 : index
    %0 = vector.load %arg2[%c0, %c0_0, %c0_1] : memref<2x8x32xf32, #tpu.memory_space<vmem>>, vector<2x8x32xf32>
    %c0_2 = arith.constant 0 : index
    %c0_3 = arith.constant 0 : index
    %c0_4 = arith.constant 0 : index
    %1 = vector.load %arg3[%c0_2, %c0_3, %c0_4] : memref<2x1x8xf32, #tpu.memory_space<vmem>>, vector<2x1x8xf32>
    %2 = vector.shape_cast %1 : vector<2x1x8xf32> to vector<2x8xf32>
    %3 = vector.shape_cast %0 : vector<2x8x32xf32> to vector<16x32xf32>
    %4 = arith.truncf %3 : vector<16x32xf32> to vector<16x32xbf16>
    %c0_5 = arith.constant 0 : index
    %c0_6 = arith.constant 0 : index
    %5 = vector.load %arg4[%c0_5, %c0_6] : memref<32x256xbf16, #tpu.memory_space<vmem>>, vector<32x256xbf16>
    %cst = arith.constant dense<0.000000e+00> : vector<16x256xf32>
    %6 = tpu.matmul %4, %5, %cst {dimension_numbers = #tpu.dot_dimension_numbers<[1], [0], [0], [1], [0, 0, 1, 1], [], []>} : vector<16x32xbf16>, vector<32x256xbf16>, vector<16x256xf32> -> vector<16x256xf32>
    %c0_7 = arith.constant 0 : index
    %c0_8 = arith.constant 0 : index
    %7 = vector.load %arg5[%c0_7, %c0_8] : memref<1x256xf32, #tpu.memory_space<vmem>>, vector<1x256xf32>
    %8 = vector.broadcast %7 : vector<1x256xf32> to vector<16x256xf32>
    %9 = arith.addf %6, %8 : vector<16x256xf32>
    %10 = vector.extract_strided_slice %9 {offsets = [0, 0], sizes = [16, 128], strides = [1, 1]} : vector<16x256xf32> to vector<16x128xf32>
    %11 = vector.extract_strided_slice %9 {offsets = [0, 128], sizes = [16, 128], strides = [1, 1]} : vector<16x256xf32> to vector<16x128xf32>
    %12 = arith.negf %11 : vector<16x128xf32>
    %13 = math.exp %12 : vector<16x128xf32>
    %cst_9 = arith.constant 1.000000e+00 : f32
    %14 = vector.broadcast %cst_9 : f32 to vector<16x128xf32>
    %15 = arith.addf %14, %13 : vector<16x128xf32>
    %16 = arith.divf %14, %15 : vector<16x128xf32>
    %17 = arith.mulf %10, %16 : vector<16x128xf32>
    %18 = math.tanh %17 : vector<16x128xf32>
    %19 = vector.shape_cast %18 : vector<16x128xf32> to vector<2x8x128xf32>
    %c0_10 = arith.constant 0 : index
    %c0_11 = arith.constant 0 : index
    %20 = vector.load %arg6[%c0_10, %c0_11] : memref<1x128xf32, #tpu.memory_space<vmem>>, vector<1x128xf32>
    %21 = vector.shape_cast %20 : vector<1x128xf32> to vector<1x1x128xf32>
    %22 = vector.broadcast %21 : vector<1x1x128xf32> to vector<2x8x128xf32>
    %23 = arith.mulf %19, %22 : vector<2x8x128xf32>
    %cst_12 = arith.constant dense<0.000000e+00> : vector<2x8xf32>
    %24 = vector.multi_reduction <add>, %23, %cst_12 [2] : vector<2x8x128xf32> to vector<2x8xf32>
    %c0_13 = arith.constant 0 : index
    %c0_14 = arith.constant 0 : index
    %25 = vector.load %arg7[%c0_13, %c0_14] : memref<1x1xf32, #tpu.memory_space<vmem>>, vector<1x1xf32>
    %26 = vector.broadcast %25 : vector<1x1xf32> to vector<2x8xf32>
    %27 = arith.addf %24, %26 : vector<2x8xf32>
    %cst_15 = arith.constant 5.000000e-01 : f32
    %28 = vector.broadcast %cst_15 : f32 to vector<2x8xf32>
    %29 = arith.cmpf ogt, %2, %28 : vector<2x8xf32>
    %cst_16 = arith.constant -1.000000e+09 : f32
    %30 = vector.broadcast %cst_16 : f32 to vector<2x8xf32>
    %31 = arith.select %29, %30, %27 : vector<2x8xi1>, vector<2x8xf32>
    %cst_17 = arith.constant dense<0xFF800000> : vector<2xf32>
    %32 = vector.multi_reduction <maximumf>, %31, %cst_17 [1] : vector<2x8xf32> to vector<2xf32>
    %33 = vector.shape_cast %32 : vector<2xf32> to vector<2x1xf32>
    %34 = vector.broadcast %33 : vector<2x1xf32> to vector<2x8xf32>
    %35 = arith.subf %31, %34 : vector<2x8xf32>
    %36 = math.exp %35 : vector<2x8xf32>
    %cst_18 = arith.constant dense<0.000000e+00> : vector<2xf32>
    %37 = vector.multi_reduction <add>, %36, %cst_18 [1] : vector<2x8xf32> to vector<2xf32>
    %38 = vector.shape_cast %37 : vector<2xf32> to vector<2x1xf32>
    %39 = vector.shape_cast %36 : vector<2x8xf32> to vector<2x8x1xf32>
    %40 = vector.broadcast %39 : vector<2x8x1xf32> to vector<2x8x32xf32>
    %41 = arith.mulf %40, %0 : vector<2x8x32xf32>
    %cst_19 = arith.constant dense<0.000000e+00> : vector<2x32xf32>
    %42 = vector.multi_reduction <add>, %41, %cst_19 [1] : vector<2x8x32xf32> to vector<2x32xf32>
    %43 = vector.broadcast %38 : vector<2x1xf32> to vector<2x32xf32>
    %44 = arith.divf %42, %43 : vector<2x32xf32>
    %c0_20 = arith.constant 0 : index
    %c0_21 = arith.constant 0 : index
    %45 = vector.load %arg8[%c0_20, %c0_21] : memref<32x32xf32, #tpu.memory_space<vmem>>, vector<32x32xf32>
    %cst_22 = arith.constant dense<0.000000e+00> : vector<2x32xf32>
    %46 = tpu.matmul %44, %45, %cst_22 {dimension_numbers = #tpu.dot_dimension_numbers<[1], [0], [0], [1], [0, 0, 1, 1], [], []>, precision = #tpu.contract_precision<fp32>} : vector<2x32xf32>, vector<32x32xf32>, vector<2x32xf32> -> vector<2x32xf32>
    %c0_23 = arith.constant 0 : index
    %c0_24 = arith.constant 0 : index
    %47 = vector.load %arg9[%c0_23, %c0_24] : memref<1x32xf32, #tpu.memory_space<vmem>>, vector<1x32xf32>
    %48 = vector.broadcast %47 : vector<1x32xf32> to vector<2x32xf32>
    %49 = arith.addf %46, %48 : vector<2x32xf32>
    %cst_25 = arith.constant 0.000000e+00 : f32
    %50 = vector.broadcast %cst_25 : f32 to vector<2x32xf32>
    %51 = arith.maximumf %49, %50 : vector<2x32xf32>
    %c0_26 = arith.constant 0 : index
    %c0_27 = arith.constant 0 : index
    %52 = vector.load %arg10[%c0_26, %c0_27] : memref<32x32xf32, #tpu.memory_space<vmem>>, vector<32x32xf32>
    %cst_28 = arith.constant dense<0.000000e+00> : vector<2x32xf32>
    %53 = tpu.matmul %51, %52, %cst_28 {dimension_numbers = #tpu.dot_dimension_numbers<[1], [0], [0], [1], [0, 0, 1, 1], [], []>, precision = #tpu.contract_precision<fp32>} : vector<2x32xf32>, vector<32x32xf32>, vector<2x32xf32> -> vector<2x32xf32>
    %c0_29 = arith.constant 0 : index
    %c0_30 = arith.constant 0 : index
    %54 = vector.load %arg11[%c0_29, %c0_30] : memref<1x32xf32, #tpu.memory_space<vmem>>, vector<1x32xf32>
    %55 = vector.broadcast %54 : vector<1x32xf32> to vector<2x32xf32>
    %56 = arith.addf %53, %55 : vector<2x32xf32>
    %cst_31 = arith.constant 0.000000e+00 : f32
    %57 = vector.broadcast %cst_31 : f32 to vector<2x32xf32>
    %58 = arith.maximumf %56, %57 : vector<2x32xf32>
    %c0_32 = arith.constant 0 : index
    %c0_33 = arith.constant 0 : index
    %59 = vector.load %arg12[%c0_32, %c0_33] : memref<32x32xf32, #tpu.memory_space<vmem>>, vector<32x32xf32>
    %cst_34 = arith.constant dense<0.000000e+00> : vector<2x32xf32>
    %60 = tpu.matmul %58, %59, %cst_34 {dimension_numbers = #tpu.dot_dimension_numbers<[1], [0], [0], [1], [0, 0, 1, 1], [], []>, precision = #tpu.contract_precision<fp32>} : vector<2x32xf32>, vector<32x32xf32>, vector<2x32xf32> -> vector<2x32xf32>
    %c0_35 = arith.constant 0 : index
    %c0_36 = arith.constant 0 : index
    %61 = vector.load %arg13[%c0_35, %c0_36] : memref<1x32xf32, #tpu.memory_space<vmem>>, vector<1x32xf32>
    %62 = vector.broadcast %61 : vector<1x32xf32> to vector<2x32xf32>
    %63 = arith.addf %60, %62 : vector<2x32xf32>
    %64 = vector.shape_cast %63 : vector<2x32xf32> to vector<1x2x32xf32>
    %c0_37 = arith.constant 0 : index
    %c0_38 = arith.constant 0 : index
    %c0_39 = arith.constant 0 : index
    %65 = vector.load %arg14[%c0_37, %c0_38, %c0_39] : memref<1x2x32xf32, #tpu.memory_space<vmem>>, vector<1x2x32xf32>
    tpu.vector_store %arg14[%c0_37, %c0_38, %c0_39], %64 {strides = array<i32>} : memref<1x2x32xf32, #tpu.memory_space<vmem>>, vector<1x2x32xf32>,
    return
  }
  func.func @transform_0(%arg0: i32, %arg1: i32) -> (i32, i32, i32) {
    %c0_i32 = arith.constant 0 : i32
    %c0_i32_0 = arith.constant 0 : i32
    return %arg0, %arg1, %c0_i32 : i32, i32, i32
  }
  func.func @transform_1(%arg0: i32, %arg1: i32) -> (i32, i32, i32) {
    %c0_i32 = arith.constant 0 : i32
    %c0_i32_0 = arith.constant 0 : i32
    return %arg0, %c0_i32, %arg1 : i32, i32, i32
  }
  func.func @transform_2(%arg0: i32, %arg1: i32) -> (i32, i32) {
    %c0_i32 = arith.constant 0 : i32
    %c0_i32_0 = arith.constant 0 : i32
    %c0_i32_1 = arith.constant 0 : i32
    return %c0_i32, %c0_i32_0 : i32, i32
  }
  func.func @transform_3(%arg0: i32, %arg1: i32) -> (i32, i32) {
    %c0_i32 = arith.constant 0 : i32
    %c0_i32_0 = arith.constant 0 : i32
    %c0_i32_1 = arith.constant 0 : i32
    return %c0_i32, %c0_i32_0 : i32, i32
  }
  func.func @transform_4(%arg0: i32, %arg1: i32) -> (i32, i32) {
    %c0_i32 = arith.constant 0 : i32
    %c0_i32_0 = arith.constant 0 : i32
    %c0_i32_1 = arith.constant 0 : i32
    return %c0_i32, %c0_i32_0 : i32, i32
  }
  func.func @transform_5(%arg0: i32, %arg1: i32) -> (i32, i32) {
    %c0_i32 = arith.constant 0 : i32
    %c0_i32_0 = arith.constant 0 : i32
    %c0_i32_1 = arith.constant 0 : i32
    return %c0_i32, %c0_i32_0 : i32, i32
  }
  func.func @transform_6(%arg0: i32, %arg1: i32) -> (i32, i32) {
    %c0_i32 = arith.constant 0 : i32
    %c0_i32_0 = arith.constant 0 : i32
    %c0_i32_1 = arith.constant 0 : i32
    return %c0_i32, %c0_i32_0 : i32, i32
  }
  func.func @transform_7(%arg0: i32, %arg1: i32) -> (i32, i32) {
    %c0_i32 = arith.constant 0 : i32
    %c0_i32_0 = arith.constant 0 : i32
    %c0_i32_1 = arith.constant 0 : i32
    return %c0_i32, %c0_i32_0 : i32, i32
  }
  func.func @transform_8(%arg0: i32, %arg1: i32) -> (i32, i32) {
    %c0_i32 = arith.constant 0 : i32
    %c0_i32_0 = arith.constant 0 : i32
    %c0_i32_1 = arith.constant 0 : i32
    return %c0_i32, %c0_i32_0 : i32, i32
  }
  func.func @transform_9(%arg0: i32, %arg1: i32) -> (i32, i32) {
    %c0_i32 = arith.constant 0 : i32
    %c0_i32_0 = arith.constant 0 : i32
    %c0_i32_1 = arith.constant 0 : i32
    return %c0_i32, %c0_i32_0 : i32, i32
  }
  func.func @transform_10(%arg0: i32, %arg1: i32) -> (i32, i32) {
    %c0_i32 = arith.constant 0 : i32
    %c0_i32_0 = arith.constant 0 : i32
    %c0_i32_1 = arith.constant 0 : i32
    return %c0_i32, %c0_i32_0 : i32, i32
  }
  func.func @transform_11(%arg0: i32, %arg1: i32) -> (i32, i32) {
    %c0_i32 = arith.constant 0 : i32
    %c0_i32_0 = arith.constant 0 : i32
    %c0_i32_1 = arith.constant 0 : i32
    return %c0_i32, %c0_i32_0 : i32, i32
  }
  func.func @transform_12(%arg0: i32, %arg1: i32) -> (i32, i32, i32) {
    %c0_i32 = arith.constant 0 : i32
    %c0_i32_0 = arith.constant 0 : i32
    %c0_i32_1 = arith.constant 0 : i32
    return %arg0, %c0_i32, %c0_i32_0 : i32, i32, i32
  }
}

</mosaic_0001>

<llo_original>
// kernel: tpu_custom_call.1
$region0: #{tpu_custom_call.1}
  #allocation0 [shape = 'u32[]', space=smem, size = 0x4, offset = 0x4, fixed_abs, tag = 'smem constant byte address 0x4 - core index']
  #allocation1 [shape = 'u32[72,128]{1,0:T(1,128)}', space=vmem, size = 0x9000, scoped, tag = 'internal scratch']
  #allocation2 [shape = 'f32[1,1]{1,0:T(1,128)S(1)}', space=vmem, size = 0x200, scoped, tag = 'scoped memory for tpu_custom_call.1']
  %s0 = inlined_call_operand.hbm [shape: f32[2,8,32], index: 0, kind: input, shape index: {}]
  %s1 = inlined_call_operand.vmem [shape: f32[2,1,8], index: 1, kind: input, shape index: {}]
  %s2 = inlined_call_operand.hbm [shape: bf16[32,256], index: 2, kind: input, shape index: {}]
  %s3 = inlined_call_operand.vmem [shape: f32[1,256], index: 3, kind: input, shape index: {}]
  %s4 = inlined_call_operand.vmem [shape: f32[1,128], index: 4, kind: input, shape index: {}]
  %s5 = inlined_call_operand.<no memory space> [shape: f32[1,1], index: 5, kind: input, shape index: {}]
  %s6 = inlined_call_operand.hbm [shape: f32[32,32], index: 6, kind: input, shape index: {}]
  %s7 = inlined_call_operand.vmem [shape: f32[1,32], index: 7, kind: input, shape index: {}]
  %s8 = inlined_call_operand.hbm [shape: f32[32,32], index: 8, kind: input, shape index: {}]
  %s9 = inlined_call_operand.vmem [shape: f32[1,32], index: 9, kind: input, shape index: {}]
  %s10 = inlined_call_operand.hbm [shape: f32[32,32], index: 10, kind: input, shape index: {}]
  %s11 = inlined_call_operand.vmem [shape: f32[1,32], index: 11, kind: input, shape index: {}]
  %s12 = inlined_call_operand.hbm [shape: f32[1,2,32], index: 12, kind: output, shape index: {}]
  %s13 = sld [smem:[#allocation0]]
  $region78: #{tpu_custom_call.1} parent=0
    _
  %s15 = ssub.s32 1, %s13
  %s16 = scalar_select 0, %s15, %s13
  %v17 = vstv %s5
  %18 = vst [vmem:[#allocation2] sm:$0x1] %v17
  $region1: #{tpu_custom_call.1} parent=0
    #allocation3 [shape = 'u8[8192]{0}', space=vmem, size = 0x2000, scoped, tag = 'input window, operand 0, single buffered']
    #allocation4 [shape = 's32[1]{0}', space=sflag, size = 0x4, scoped, tag = 'scoped memory for tpu_custom_call.1']
    #allocation5 [shape = 's32[1]{0}', space=sflag, size = 0x4, scoped, tag = 'scoped memory for tpu_custom_call.1']
    #allocation6 [shape = 'u8[16384]{0}', space=vmem, size = 0x4000, scoped, tag = 'input window, operand 2, single buffered']
    #allocation7 [shape = 's32[1]{0}', space=sflag, size = 0x4, scoped, tag = 'scoped memory for tpu_custom_call.1']
    #allocation8 [shape = 'u8[16384]{0}', space=vmem, size = 0x4000, scoped, tag = 'input window, operand 6, single buffered']
    #allocation9 [shape = 'u8[16384]{0}', space=vmem, size = 0x4000, scoped, tag = 'input window, operand 8, single buffered']
    #allocation10 [shape = 's32[1]{0}', space=sflag, size = 0x4, scoped, tag = 'scoped memory for tpu_custom_call.1']
    #allocation11 [shape = 'u8[16384]{0}', space=vmem, size = 0x4000, scoped, tag = 'input window, operand 10, single buffered']
    #allocation12 [shape = 'u8[1024]{0}', space=vmem, size = 0x400, scoped, tag = 'output window, operand 0, single buffered']
    %19 = vsyncpa [#allocation4], 0
    %20 = vsyncpa [#allocation7], 0
    %21 = vsyncpa [#allocation10], 0
    %22 = vsyncpa [#allocation5], 0
    // Predicated region
    $region2: #{tpu_custom_call.1} parent=1 // pred_check
      _
    $region3: #{tpu_custom_call.1} parent=1 // pred_check_branch
      %24 = sbr.rel (0) target = $region5
    $region4: #{tpu_custom_call.1} parent=1 // pred_region
      %26 = vsyncadd [#allocation4], 0
      %s27 = sshll.u32 %s0, 4
      %s28 = int_to_ptr.hbm [resolvable:$true] %s27
      %s29 = sshll.u32 [#allocation3], 4
      %s30 = int_to_ptr.vmem [resolvable:$true] %s29
      %35 = dma.hbm_to_vmem [thread:$0]  %s28, 256, %s30, [#allocation4], 128, 128, 8
    $region5: #{tpu_custom_call.1} parent=1 // pred_fallthru
      _
    // Predicated region
    $region6: #{tpu_custom_call.1} parent=1 // pred_check
      _
    $region7: #{tpu_custom_call.1} parent=1 // pred_check_branch
      %37 = sbr.rel (0) target = $region9
    $region8: #{tpu_custom_call.1} parent=1 // pred_region
      _
    $region9: #{tpu_custom_call.1} parent=1 // pred_fallthru
      _
    // Predicated region
    $region10: #{tpu_custom_call.1} parent=1 // pred_check
      _
    $region11: #{tpu_custom_call.1} parent=1 // pred_check_branch
      %39 = sbr.rel (0) target = $region13
    $region12: #{tpu_custom_call.1} parent=1 // pred_region
      %41 = vsyncadd [#allocation7], 0
      %s42 = sshll.u32 %s2, 4
      %s43 = int_to_ptr.hbm [resolvable:$true] %s42
      %s44 = sshll.u32 [#allocation6], 4
      %s45 = int_to_ptr.vmem [resolvable:$true] %s44
      %50 = dma.hbm_to_vmem [thread:$0]  %s43, 512, %s45, [#allocation7], 128, 128, 8
    $region13: #{tpu_custom_call.1} parent=1 // pred_fallthru
      _
    // Predicated region
    $region14: #{tpu_custom_call.1} parent=1 // pred_check
      _
    $region15: #{tpu_custom_call.1} parent=1 // pred_check_branch
      %52 = sbr.rel (0) target = $region17
    $region16: #{tpu_custom_call.1} parent=1 // pred_region
      _
    $region17: #{tpu_custom_call.1} parent=1 // pred_fallthru
      _
    // Predicated region
    $region18: #{tpu_custom_call.1} parent=1 // pred_check
      _
    $region19: #{tpu_custom_call.1} parent=1 // pred_check_branch
      %54 = sbr.rel (0) target = $region21
    $region20: #{tpu_custom_call.1} parent=1 // pred_region
      _
    $region21: #{tpu_custom_call.1} parent=1 // pred_fallthru
      _
    // Predicated region
    $region22: #{tpu_custom_call.1} parent=1 // pred_check
      _
    $region23: #{tpu_custom_call.1} parent=1 // pred_check_branch
      %56 = sbr.rel (0) target = $region25
    $region24: #{tpu_custom_call.1} parent=1 // pred_region
      _
    $region25: #{tpu_custom_call.1} parent=1 // pred_fallthru
      _
    // Predicated region
    $region26: #{tpu_custom_call.1} parent=1 // pred_check
      _
    $region27: #{tpu_custom_call.1} parent=1 // pred_check_branch
      %58 = sbr.rel (0) target = $region29
    $region28: #{tpu_custom_call.1} parent=1 // pred_region
      %60 = vsyncadd [#allocation7], 0
      %s61 = sshll.u32 %s6, 4
      %s62 = int_to_ptr.hbm [resolvable:$true] %s61
      %s63 = sshll.u32 [#allocation8], 4
      %s64 = int_to_ptr.vmem [resolvable:$true] %s63
      %69 = dma.hbm_to_vmem [thread:$0]  %s62, 512, %s64, [#allocation7], 128, 128, 8
    $region29: #{tpu_custom_call.1} parent=1 // pred_fallthru
      _
    // Predicated region
    $region30: #{tpu_custom_call.1} parent=1 // pred_check
      _
    $region31: #{tpu_custom_call.1} parent=1 // pred_check_branch
      %71 = sbr.rel (0) target = $region33
    $region32: #{tpu_custom_call.1} parent=1 // pred_region
      _
    $region33: #{tpu_custom_call.1} parent=1 // pred_fallthru
      _
    // Predicated region
    $region34: #{tpu_custom_call.1} parent=1 // pred_check
      _
    $region35: #{tpu_custom_call.1} parent=1 // pred_check_branch
      %73 = sbr.rel (0) target = $region37
    $region36: #{tpu_custom_call.1} parent=1 // pred_region
      %75 = vsyncadd [#allocation10], 0
      %s76 = sshll.u32 %s8, 4
      %s77 = int_to_ptr.hbm [resolvable:$true] %s76
      %s78 = sshll.u32 [#allocation9], 4
      %s79 = int_to_ptr.vmem [resolvable:$true] %s78
      %84 = dma.hbm_to_vmem [thread:$0]  %s77, 512, %s79, [#allocation10], 128, 128, 8
    $region37: #{tpu_custom_call.1} parent=1 // pred_fallthru
      _
    // Predicated region
    $region38: #{tpu_custom_call.1} parent=1 // pred_check
      _
    $region39: #{tpu_custom_call.1} parent=1 // pred_check_branch
      %86 = sbr.rel (0) target = $region41
    $region40: #{tpu_custom_call.1} parent=1 // pred_region
      _
    $region41: #{tpu_custom_call.1} parent=1 // pred_fallthru
      _
    // Predicated region
    $region42: #{tpu_custom_call.1} parent=1 // pred_check
      _
    $region43: #{tpu_custom_call.1} parent=1 // pred_check_branch
      %88 = sbr.rel (0) target = $region45
    $region44: #{tpu_custom_call.1} parent=1 // pred_region
      %90 = vsyncadd [#allocation10], 0
      %s91 = sshll.u32 %s10, 4
      %s92 = int_to_ptr.hbm [resolvable:$true] %s91
      %s93 = sshll.u32 [#allocation11], 4
      %s94 = int_to_ptr.vmem [resolvable:$true] %s93
      %99 = dma.hbm_to_vmem [thread:$0]  %s92, 512, %s94, [#allocation10], 128, 128, 8
    $region45: #{tpu_custom_call.1} parent=1 // pred_fallthru
      _
    // Predicated region
    $region46: #{tpu_custom_call.1} parent=1 // pred_check
      _
    $region47: #{tpu_custom_call.1} parent=1 // pred_check_branch
      %101 = sbr.rel (0) target = $region49
    $region48: #{tpu_custom_call.1} parent=1 // pred_region
      _
    $region49: #{tpu_custom_call.1} parent=1 // pred_fallthru
      _
    // Predicated region
    $region50: #{tpu_custom_call.1} parent=1 // pred_check
      _
    $region51: #{tpu_custom_call.1} parent=1 // pred_check_branch
      %103 = sbr.rel (0) target = $region53
    $region52: #{tpu_custom_call.1} parent=1 // pred_region
      %105 = dma.done [#allocation4], 256
    $region53: #{tpu_custom_call.1} parent=1 // pred_fallthru
      _
    // Predicated region
    $region54: #{tpu_custom_call.1} parent=1 // pred_check
      _
    $region55: #{tpu_custom_call.1} parent=1 // pred_check_branch
      %107 = sbr.rel (0) target = $region57
    $region56: #{tpu_custom_call.1} parent=1 // pred_region
      %109 = dma.done [#allocation7], 512
    $region57: #{tpu_custom_call.1} parent=1 // pred_fallthru
      _
    // Predicated region
    $region58: #{tpu_custom_call.1} parent=1 // pred_check
      _
    $region59: #{tpu_custom_call.1} parent=1 // pred_check_branch
      %111 = sbr.rel (0) target = $region61
    $region60: #{tpu_custom_call.1} parent=1 // pred_region
      %113 = dma.done [#allocation7], 512
    $region61: #{tpu_custom_call.1} parent=1 // pred_fallthru
      _
    // Predicated region
    $region62: #{tpu_custom_call.1} parent=1 // pred_check
      _
    $region63: #{tpu_custom_call.1} parent=1 // pred_check_branch
      %115 = sbr.rel (0) target = $region65
    $region64: #{tpu_custom_call.1} parent=1 // pred_region
      %117 = dma.done [#allocation10], 512
    $region65: #{tpu_custom_call.1} parent=1 // pred_fallthru
      _
    // Predicated region
    $region66: #{tpu_custom_call.1} parent=1 // pred_check
      _
    $region67: #{tpu_custom_call.1} parent=1 // pred_check_branch
      %119 = sbr.rel (0) target = $region69
    $region68: #{tpu_custom_call.1} parent=1 // pred_region
      %121 = dma.done [#allocation10], 512
    $region69: #{tpu_custom_call.1} parent=1 // pred_fallthru
      _
    %v123 = vld [vmem:[#allocation3] sm:$0xff]
    %v124 = vld [vmem:[#allocation3 + $0x8] sm:$0xff]
    %v125 = vld [vmem:[%s1] sm:$0x1]
    %v126 = vld [vmem:[%s1 + $0x1] sm:$0x1]
    %v127 = vpack.c.bf16 %v124, %v123
    %v128 = vld [vmem:[#allocation6] sm:$0xff]
    %v129 = vld [vmem:[#allocation6 + $0x8] sm:$0xff]
    %v130 = vld [vmem:[#allocation6 + $0x10] sm:$0xff]
    %v131 = vld [vmem:[#allocation6 + $0x18] sm:$0xff]
    %v132 = vld [vmem:[%s3] sm:$0x3]
    %v134 = vperm.slane %v132, 0
    %v135 = vperm.slane %v132, 1
    %v142 = vunpack.c.l.b16 %v128
    %v143 = vunpack.c.h.b16 %v128
    %v144 = vunpack.c.l.b16 %v129
    %v145 = vunpack.c.h.b16 %v129
    %v146 = vunpack.c.l.b16 %v130
    %v147 = vunpack.c.h.b16 %v130
    %v148 = vunpack.c.l.b16 %v131
    %v149 = vunpack.c.h.b16 %v131
    %v150 = vpack.c.b16 %v144, %v142
    %v151 = vpack.c.b16 %v145, %v143
    %v152 = vpack.c.b16 %v148, %v146
    %v153 = vpack.c.b16 %v149, %v147
    %vm158 = vcmask 261120
    %v160 = vsel %vm158, %v127, 0
    %162 = vmatpush.bf16.msra.mxu0 0
    %163 = vmatpush.bf16.msra.mxu0 0
    %164 = vmatpush.bf16.msra.mxu0 0
    %165 = vmatpush.bf16.msra.mxu0 0
    %166 = vmatpush.bf16.msra.mxu0 0
    %167 = vmatpush.bf16.msra.mxu0 0
    %168 = vmatpush.bf16.msra.mxu0 %v152
    %169 = vmatpush.bf16.msra.mxu0 %v150
    %170 = vmatmul.bf16.gmra.mxu0 %v160
    %v171 = vpop.f32.mrf.mxu0
    %v172 = vadd.f32 %v134, %v171
    %v173 = vpop.f32.mrf.mxu0
    %v174 = vadd.f32 %v134, %v173
    %175 = vdwg.mxu0
    %176 = vmatpush.bf16.msra.mxu0 0
    %177 = vmatpush.bf16.msra.mxu0 0
    %178 = vmatpush.bf16.msra.mxu0 0
    %179 = vmatpush.bf16.msra.mxu0 0
    %180 = vmatpush.bf16.msra.mxu0 0
    %181 = vmatpush.bf16.msra.mxu0 0
    %182 = vmatpush.bf16.msra.mxu0 %v153
    %183 = vmatpush.bf16.msra.mxu0 %v151
    %184 = vmatmul.bf16.gmra.mxu0 %v160
    %v185 = vpop.f32.mrf.mxu0
    %v186 = vadd.f32 %v135, %v185
    %v187 = vpop.f32.mrf.mxu0
    %v188 = vadd.f32 %v135, %v187
    %189 = vdwg.mxu0
    %v190 = vxor.u32 %v186, 2147483648
    %v191 = vxor.u32 %v188, 2147483648
    %v192 = vmul.f32 %v190, 1.442695
    %v193 = vpow.pop %v192
    %v194 = vmul.f32 %v191, 1.442695
    %v195 = vpow.pop %v194
    %v196 = vadd.f32 %v193, 1.0
    %v197 = vadd.f32 %v195, 1.0
    %v198 = vrcp.pop %v196
    %v199 = vmul.f32 %v196, %v198
    %v200 = vsub.f32 1.0, %v199
    %v201 = vmul.f32 %v198, %v200
    %v202 = vadd.f32 %v198, %v201
    %vm203 = vweird.f32 %v196
    %vm204 = vweird.f32 %v198
    %vm205 = vmor %vm203, %vm204
    %v206 = vsel %vm205, %v198, %v202
    %v207 = vand.u32 2147483647, %v196
    %vm208 = vcmp.eq.f32.partialorder %v207, 8.507059e+37
    %v209 = vand.u32 %v196, 2147483648
    %v210 = vor.u32 1.1754944e-38, %v209
    %v211 = vsel %vm208, %v210, %v206
    %v212 = vmul.f32 1.0, %v211
    %v213 = vrcp.pop %v197
    %v214 = vmul.f32 %v197, %v213
    %v215 = vsub.f32 1.0, %v214
    %v216 = vmul.f32 %v213, %v215
    %v217 = vadd.f32 %v213, %v216
    %vm218 = vweird.f32 %v197
    %vm219 = vweird.f32 %v213
    %vm220 = vmor %vm218, %vm219
    %v221 = vsel %vm220, %v213, %v217
    %v222 = vand.u32 2147483647, %v197
    %vm223 = vcmp.eq.f32.partialorder %v222, 8.507059e+37
    %v224 = vand.u32 %v197, 2147483648
    %v225 = vor.u32 1.1754944e-38, %v224
    %v226 = vsel %vm223, %v225, %v221
    %v227 = vmul.f32 1.0, %v226
    %v228 = vmul.f32 %v172, %v212
    %v229 = vmul.f32 %v174, %v227
    %v230 = vtanh.pop %v228
    %v231 = vtanh.pop %v229
    %v232 = vld [vmem:[%s4] sm:$0x1]
    %v234 = vperm.slane %v232, 0
    %v236 = vmul.f32 %v230, %v234
    %v237 = vmul.f32 %v231, %v234
    %238 = vadd.xlane.f32.xlu0 %v236
    %v239 = vpop.xlane.xlu0 %238
    %240 = vadd.xlane.f32.xlu0 %v237
    %v241 = vpop.xlane.xlu0 %240
    %v242 = vld [vmem:[#allocation2] sm:$0x1]
    %v244 = vperm.slane %v242, 0
    %245 = vset.pattern.permute.xlu0 0
    %246 = vperm.xlu0 %245, %v244
    %v247 = vpop.permute.xlu0 %246
    %v249 = vadd.f32 %v239, %v247
    %v250 = vadd.f32 %v241, %v247
    %vm251 = vcmp.gt.f32.partialorder %v125, 0.5
    %vm252 = vcmp.gt.f32.partialorder %v126, 0.5
    %v255 = vperm.slane %v249, 0
    %v256 = vperm.slane %v249, 1
    %v257 = vperm.slane %v249, 2
    %v258 = vperm.slane %v249, 3
    %v259 = vperm.slane %v249, 4
    %v260 = vperm.slane %v249, 5
    %v261 = vperm.slane %v249, 6
    %v262 = vperm.slane %v249, 7
    %v263 = vperm.slane %v250, 0
    %v264 = vperm.slane %v250, 1
    %v265 = vperm.slane %v250, 2
    %v266 = vperm.slane %v250, 3
    %v267 = vperm.slane %v250, 4
    %v268 = vperm.slane %v250, 5
    %v269 = vperm.slane %v250, 6
    %v270 = vperm.slane %v250, 7
    %271 = vst [vmem:[#allocation1] ss:$9 sm:$0xff] %v255
    %s272 = scalar_lea.vmem [#allocation1], 1
    %273 = vst [vmem:[%s272] ss:$9 sm:$0xff] %v256
    %s274 = scalar_lea.vmem [#allocation1], 2
    %275 = vst [vmem:[%s274] ss:$9 sm:$0xff] %v257
    %s276 = scalar_lea.vmem [#allocation1], 3
    %277 = vst [vmem:[%s276] ss:$9 sm:$0xff] %v258
    %s278 = scalar_lea.vmem [#allocation1], 4
    %279 = vst [vmem:[%s278] ss:$9 sm:$0xff] %v259
    %s280 = scalar_lea.vmem [#allocation1], 5
    %281 = vst [vmem:[%s280] ss:$9 sm:$0xff] %v260
    %s282 = scalar_lea.vmem [#allocation1], 6
    %283 = vst [vmem:[%s282] ss:$9 sm:$0xff] %v261
    %s284 = scalar_lea.vmem [#allocation1], 7
    %285 = vst [vmem:[%s284] ss:$9 sm:$0xff] %v262
    %v286 = vld [vmem:[#allocation1] sm:$0xff]
    %287 = vst [vmem:[#allocation1] ss:$9 sm:$0xff] %v263
    %288 = vst [vmem:[%s272] ss:$9 sm:$0xff] %v264
    %289 = vst [vmem:[%s274] ss:$9 sm:$0xff] %v265
    %290 = vst [vmem:[%s276] ss:$9 sm:$0xff] %v266
    %291 = vst [vmem:[%s278] ss:$9 sm:$0xff] %v267
    %292 = vst [vmem:[%s280] ss:$9 sm:$0xff] %v268
    %293 = vst [vmem:[%s282] ss:$9 sm:$0xff] %v269
    %294 = vst [vmem:[%s284] ss:$9 sm:$0xff] %v270
    %v295 = vld [vmem:[#allocation1] sm:$0xff]
    %296 = vset.pattern.permute.xlu0 0
    %297 = vperm.xlu0 %296, %v286
    %v298 = vpop.permute.xlu0 %297
    %299 = vset.pattern.permute.xlu0 0
    %300 = vperm.xlu0 %299, %v295
    %v301 = vpop.permute.xlu0 %300
    %v302 = vlaneseq
    %v303 = vand.u32 %v302, 127
    %v304 = vperm.slane %v298, %v303
    %v305 = vperm.slane %v301, %v303
    %v308 = vsel %vm251, -1e+09, %v304
    %v309 = vsel %vm252, -1e+09, %v305
    %312 = vst [vmem:[#allocation1] ss:$9 sm:$0xff] %v308
    %s313 = scalar_lea.vmem [#allocation1], 1
    %314 = vst [vmem:[%s313] ss:$9 sm:$0xff] %v309
    %v315 = vld [vmem:[#allocation1] sm:$0xff]
    %vm317 = vcmask 58368
    %v318 = vsel %vm317, %v315, -inf
    %319 = vmax.xlane.f32.xlu0 %v318
    %v320 = vpop.xlane.xlu0 %319
    %v322 = vperm.slane %v320, 0
    %v323 = vperm.slane %v320, 1
    %v326 = vsub.f32 %v308, %v322
    %v327 = vsub.f32 %v309, %v323
    %v328 = vmul.f32 %v326, 1.442695
    %v329 = vpow.pop %v328
    %v330 = vmul.f32 %v327, 1.442695
    %v331 = vpow.pop %v330
    %334 = vst [vmem:[#allocation1] ss:$9 sm:$0xff] %v329
    %s335 = scalar_lea.vmem [#allocation1], 1
    %336 = vst [vmem:[%s335] ss:$9 sm:$0xff] %v331
    %v337 = vld [vmem:[#allocation1] sm:$0xff]
    %v339 = vsel %vm317, %v337, 0.0
    %340 = vadd.xlane.f32.xlu0 %v339
    %v341 = vpop.xlane.xlu0 %340
    %v342 = vperm.slane %v329, 0
    %v343 = vlaneseq
    %v344 = vshrl.u32 %v343, 7
    %346 = vset.pattern.permute.xlu0 %v344
    %347 = vperm.xlu0 %346, %v342
    %v348 = vpop.permute.xlu0 %347
    %v349 = vperm.slane %v331, 0
    %v350 = vlaneseq
    %v351 = vshrl.u32 %v350, 7
    %353 = vset.pattern.permute.xlu0 %v351
    %354 = vperm.xlu0 %353, %v349
    %v355 = vpop.permute.xlu0 %354
    %v356 = vmul.f32 %v348, %v123
    %v357 = vmul.f32 %v355, %v124
    %v358 = vsel %vm158, %v356, 0.0
    %v359 = vrot.slane %v358, 4
    %v360 = vadd.f32 %v358, %v359
    %v361 = vrot.slane %v360, 2
    %v362 = vadd.f32 %v360, %v361
    %v363 = vrot.slane %v362, 1
    %v364 = vadd.f32 %v362, %v363
    %v365 = vsel %vm158, %v357, 0.0
    %v366 = vrot.slane %v365, 4
    %v367 = vadd.f32 %v365, %v366
    %v368 = vrot.slane %v367, 2
    %v369 = vadd.f32 %v367, %v368
    %v370 = vrot.slane %v369, 1
    %v371 = vadd.f32 %v369, %v370
    %v373 = vrot.slane %v341, 1
    %v376 = vrcp.pop %v341
    %v377 = vmul.f32 %v341, %v376
    %v378 = vsub.f32 1.0, %v377
    %v379 = vmul.f32 %v376, %v378
    %v380 = vadd.f32 %v376, %v379
    %vm381 = vweird.f32 %v341
    %vm382 = vweird.f32 %v376
    %vm383 = vmor %vm381, %vm382
    %v384 = vsel %vm383, %v376, %v380
    %v385 = vand.u32 2147483647, %v341
    %vm386 = vcmp.eq.f32.partialorder %v385, 8.507059e+37
    %v387 = vand.u32 %v341, 2147483648
    %v388 = vor.u32 1.1754944e-38, %v387
    %v389 = vsel %vm386, %v388, %v384
    %v390 = vmul.f32 %v364, %v389
    %v391 = vrcp.pop %v373
    %v392 = vmul.f32 %v373, %v391
    %v393 = vsub.f32 1.0, %v392
    %v394 = vmul.f32 %v391, %v393
    %v395 = vadd.f32 %v391, %v394
    %vm396 = vweird.f32 %v373
    %vm397 = vweird.f32 %v391
    %vm398 = vmor %vm396, %vm397
    %v399 = vsel %vm398, %v391, %v395
    %v400 = vand.u32 2147483647, %v373
    %vm401 = vcmp.eq.f32.partialorder %v400, 8.507059e+37
    %v402 = vand.u32 %v373, 2147483648
    %v403 = vor.u32 1.1754944e-38, %v402
    %v404 = vsel %vm401, %v403, %v399
    %v405 = vmul.f32 %v371, %v404
    %v406 = vld [vmem:[#allocation8] sm:$0xff]
    %v407 = vld [vmem:[#allocation8 + $0x8] sm:$0xff]
    %v408 = vld [vmem:[#allocation8 + $0x10] sm:$0xff]
    %v409 = vld [vmem:[#allocation8 + $0x18] sm:$0xff]
    %v410 = vld [vmem:[%s7] sm:$0x1]
    %v412 = vperm.slane %v410, 0
    %v416 = vrot.slane %v405, 7
    %vm417 = vcmask 1041409
    %v418 = vsel %vm417, %v416, %v390
    %v419 = vsel %vm158, %v418, 0
    %421 = vmatpush.msra.mxu0 0.0
    %422 = vmatpush.msra.mxu0 0.0
    %423 = vmatpush.msra.mxu0 0.0
    %424 = vmatpush.msra.mxu0 0.0
    %425 = vmatpush.msra.mxu0 0.0
    %426 = vmatpush.msra.mxu0 0.0
    %427 = vmatpush.msra.mxu0 0.0
    %428 = vmatpush.msra.mxu0 0.0
    %429 = vmatpush.msra.mxu0 0.0
    %430 = vmatpush.msra.mxu0 0.0
    %431 = vmatpush.msra.mxu0 0.0
    %432 = vmatpush.msra.mxu0 0.0
    %v433 = vand.u32 %v409, 4294901760
    %434 = vmatpush.msra.mxu0 %v433
    %v435 = vand.u32 %v408, 4294901760
    %436 = vmatpush.msra.mxu0 %v435
    %v437 = vand.u32 %v407, 4294901760
    %438 = vmatpush.msra.mxu0 %v437
    %v439 = vand.u32 %v406, 4294901760
    %440 = vmatpush.msra.mxu0 %v439
    %v441 = vand.u32 %v419, 4294901760
    %v442 = vsub.f32 %v419, %v441
    %v443 = vand.u32 %v442, 4294901760
    %v444 = vsub.f32 %v442, %v443
    %v445 = vand.u32 %v444, 4294901760
    %446 = vmatmul.f32.gmra.mxu0 %v445
    %v447 = vpop.f32.mrf.mxu0
    %v448 = vadd.f32 %v412, %v447
    %449 = vdwg.mxu0
    %450 = vmatpush.msra.mxu0 0.0
    %451 = vmatpush.msra.mxu0 0.0
    %452 = vmatpush.msra.mxu0 0.0
    %453 = vmatpush.msra.mxu0 0.0
    %454 = vmatpush.msra.mxu0 0.0
    %455 = vmatpush.msra.mxu0 0.0
    %456 = vmatpush.msra.mxu0 0.0
    %457 = vmatpush.msra.mxu0 0.0
    %458 = vmatpush.msra.mxu0 0.0
    %459 = vmatpush.msra.mxu0 0.0
    %460 = vmatpush.msra.mxu0 0.0
    %461 = vmatpush.msra.mxu0 0.0
    %v462 = vand.u32 %v409, 4294901760
    %v463 = vsub.f32 %v409, %v462
    %v464 = vand.u32 %v463, 4294901760
    %v465 = vsub.f32 %v463, %v464
    %v466 = vand.u32 %v465, 4294901760
    %467 = vmatpush.msra.mxu0 %v466
    %v468 = vand.u32 %v408, 4294901760
    %v469 = vsub.f32 %v408, %v468
    %v470 = vand.u32 %v469, 4294901760
    %v471 = vsub.f32 %v469, %v470
    %v472 = vand.u32 %v471, 4294901760
    %473 = vmatpush.msra.mxu0 %v472
    %v474 = vand.u32 %v407, 4294901760
    %v475 = vsub.f32 %v407, %v474
    %v476 = vand.u32 %v475, 4294901760
    %v477 = vsub.f32 %v475, %v476
    %v478 = vand.u32 %v477, 4294901760
    %479 = vmatpush.msra.mxu0 %v478
    %v480 = vand.u32 %v406, 4294901760
    %v481 = vsub.f32 %v406, %v480
    %v482 = vand.u32 %v481, 4294901760
    %v483 = vsub.f32 %v481, %v482
    %v484 = vand.u32 %v483, 4294901760
    %485 = vmatpush.msra.mxu0 %v484
    %v486 = vand.u32 %v419, 4294901760
    %487 = vmatmul.f32.gmra.mxu0 %v486
    %v488 = vpop.f32.mrf.mxu0
    %v489 = vadd.f32 %v448, %v488
    %490 = vdwg.mxu0
    %491 = vmatpush.msra.mxu0 0.0
    %492 = vmatpush.msra.mxu0 0.0
    %493 = vmatpush.msra.mxu0 0.0
    %494 = vmatpush.msra.mxu0 0.0
    %495 = vmatpush.msra.mxu0 0.0
    %496 = vmatpush.msra.mxu0 0.0
    %497 = vmatpush.msra.mxu0 0.0
    %498 = vmatpush.msra.mxu0 0.0
    %499 = vmatpush.msra.mxu0 0.0
    %500 = vmatpush.msra.mxu0 0.0
    %501 = vmatpush.msra.mxu0 0.0
    %502 = vmatpush.msra.mxu0 0.0
    %v503 = vand.u32 %v409, 4294901760
    %v504 = vsub.f32 %v409, %v503
    %505 = vmatpush.msra.mxu0 %v504
    %v506 = vand.u32 %v408, 4294901760
    %v507 = vsub.f32 %v408, %v506
    %508 = vmatpush.msra.mxu0 %v507
    %v509 = vand.u32 %v407, 4294901760
    %v510 = vsub.f32 %v407, %v509
    %511 = vmatpush.msra.mxu0 %v510
    %v512 = vand.u32 %v406, 4294901760
    %v513 = vsub.f32 %v406, %v512
    %514 = vmatpush.msra.mxu0 %v513
    %v515 = vand.u32 %v419, 4294901760
    %v516 = vsub.f32 %v419, %v515
    %517 = vmatmul.f32.gmra.mxu0 %v516
    %v518 = vpop.f32.mrf.mxu0
    %v519 = vadd.f32 %v489, %v518
    %520 = vdwg.mxu0
    %521 = vmatpush.msra.mxu0 0.0
    %522 = vmatpush.msra.mxu0 0.0
    %523 = vmatpush.msra.mxu0 0.0
    %524 = vmatpush.msra.mxu0 0.0
    %525 = vmatpush.msra.mxu0 0.0
    %526 = vmatpush.msra.mxu0 0.0
    %527 = vmatpush.msra.mxu0 0.0
    %528 = vmatpush.msra.mxu0 0.0
    %529 = vmatpush.msra.mxu0 0.0
    %530 = vmatpush.msra.mxu0 0.0
    %531 = vmatpush.msra.mxu0 0.0
    %532 = vmatpush.msra.mxu0 0.0
    %v533 = vand.u32 %v409, 4294901760
    %534 = vmatpush.msra.mxu0 %v533
    %v535 = vand.u32 %v408, 4294901760
    %536 = vmatpush.msra.mxu0 %v535
    %v537 = vand.u32 %v407, 4294901760
    %538 = vmatpush.msra.mxu0 %v537
    %v539 = vand.u32 %v406, 4294901760
    %540 = vmatpush.msra.mxu0 %v539
    %v541 = vand.u32 %v419, 4294901760
    %v542 = vsub.f32 %v419, %v541
    %v543 = vand.u32 %v542, 4294901760
    %544 = vmatmul.f32.gmra.mxu0 %v543
    %v545 = vpop.f32.mrf.mxu0
    %v546 = vadd.f32 %v519, %v545
    %547 = vdwg.mxu0
    %548 = vmatpush.msra.mxu0 0.0
    %549 = vmatpush.msra.mxu0 0.0
    %550 = vmatpush.msra.mxu0 0.0
    %551 = vmatpush.msra.mxu0 0.0
    %552 = vmatpush.msra.mxu0 0.0
    %553 = vmatpush.msra.mxu0 0.0
    %554 = vmatpush.msra.mxu0 0.0
    %555 = vmatpush.msra.mxu0 0.0
    %556 = vmatpush.msra.mxu0 0.0
    %557 = vmatpush.msra.mxu0 0.0
    %558 = vmatpush.msra.mxu0 0.0
    %559 = vmatpush.msra.mxu0 0.0
    %v560 = vand.u32 %v409, 4294901760
    %v561 = vsub.f32 %v409, %v560
    %v562 = vand.u32 %v561, 4294901760
    %563 = vmatpush.msra.mxu0 %v562
    %v564 = vand.u32 %v408, 4294901760
    %v565 = vsub.f32 %v408, %v564
    %v566 = vand.u32 %v565, 4294901760
    %567 = vmatpush.msra.mxu0 %v566
    %v568 = vand.u32 %v407, 4294901760
    %v569 = vsub.f32 %v407, %v568
    %v570 = vand.u32 %v569, 4294901760
    %571 = vmatpush.msra.mxu0 %v570
    %v572 = vand.u32 %v406, 4294901760
    %v573 = vsub.f32 %v406, %v572
    %v574 = vand.u32 %v573, 4294901760
    %575 = vmatpush.msra.mxu0 %v574
    %v576 = vand.u32 %v419, 4294901760
    %577 = vmatmul.f32.gmra.mxu0 %v576
    %v578 = vpop.f32.mrf.mxu0
    %v579 = vadd.f32 %v546, %v578
    %580 = vdwg.mxu0
    %581 = vmatpush.msra.mxu0 0.0
    %582 = vmatpush.msra.mxu0 0.0
    %583 = vmatpush.msra.mxu0 0.0
    %584 = vmatpush.msra.mxu0 0.0
    %585 = vmatpush.msra.mxu0 0.0
    %586 = vmatpush.msra.mxu0 0.0
    %587 = vmatpush.msra.mxu0 0.0
    %588 = vmatpush.msra.mxu0 0.0
    %589 = vmatpush.msra.mxu0 0.0
    %590 = vmatpush.msra.mxu0 0.0
    %591 = vmatpush.msra.mxu0 0.0
    %592 = vmatpush.msra.mxu0 0.0
    %v593 = vand.u32 %v409, 4294901760
    %594 = vmatpush.msra.mxu0 %v593
    %v595 = vand.u32 %v408, 4294901760
    %596 = vmatpush.msra.mxu0 %v595
    %v597 = vand.u32 %v407, 4294901760
    %598 = vmatpush.msra.mxu0 %v597
    %v599 = vand.u32 %v406, 4294901760
    %600 = vmatpush.msra.mxu0 %v599
    %v601 = vand.u32 %v419, 4294901760
    %602 = vmatmul.f32.gmra.mxu0 %v601
    %v603 = vpop.f32.mrf.mxu0
    %v604 = vadd.f32 %v579, %v603
    %605 = vdwg.mxu0
    %v606 = vmax.f32 %v604, 0.0
    %v607 = vld [vmem:[#allocation9] sm:$0xff]
    %v608 = vld [vmem:[#allocation9 + $0x8] sm:$0xff]
    %v609 = vld [vmem:[#allocation9 + $0x10] sm:$0xff]
    %v610 = vld [vmem:[#allocation9 + $0x18] sm:$0xff]
    %v611 = vld [vmem:[%s9] sm:$0x1]
    %v613 = vperm.slane %v611, 0
    %v616 = vsel %vm158, %v606, 0
    %618 = vmatpush.msra.mxu0 0.0
    %619 = vmatpush.msra.mxu0 0.0
    %620 = vmatpush.msra.mxu0 0.0
    %621 = vmatpush.msra.mxu0 0.0
    %622 = vmatpush.msra.mxu0 0.0
    %623 = vmatpush.msra.mxu0 0.0
    %624 = vmatpush.msra.mxu0 0.0
    %625 = vmatpush.msra.mxu0 0.0
    %626 = vmatpush.msra.mxu0 0.0
    %627 = vmatpush.msra.mxu0 0.0
    %628 = vmatpush.msra.mxu0 0.0
    %629 = vmatpush.msra.mxu0 0.0
    %v630 = vand.u32 %v610, 4294901760
    %631 = vmatpush.msra.mxu0 %v630
    %v632 = vand.u32 %v609, 4294901760
    %633 = vmatpush.msra.mxu0 %v632
    %v634 = vand.u32 %v608, 4294901760
    %635 = vmatpush.msra.mxu0 %v634
    %v636 = vand.u32 %v607, 4294901760
    %637 = vmatpush.msra.mxu0 %v636
    %v638 = vand.u32 %v616, 4294901760
    %v639 = vsub.f32 %v616, %v638
    %v640 = vand.u32 %v639, 4294901760
    %v641 = vsub.f32 %v639, %v640
    %v642 = vand.u32 %v641, 4294901760
    %643 = vmatmul.f32.gmra.mxu0 %v642
    %v644 = vpop.f32.mrf.mxu0
    %v645 = vadd.f32 %v613, %v644
    %646 = vdwg.mxu0
    %647 = vmatpush.msra.mxu0 0.0
    %648 = vmatpush.msra.mxu0 0.0
    %649 = vmatpush.msra.mxu0 0.0
    %650 = vmatpush.msra.mxu0 0.0
    %651 = vmatpush.msra.mxu0 0.0
    %652 = vmatpush.msra.mxu0 0.0
    %653 = vmatpush.msra.mxu0 0.0
    %654 = vmatpush.msra.mxu0 0.0
    %655 = vmatpush.msra.mxu0 0.0
    %656 = vmatpush.msra.mxu0 0.0
    %657 = vmatpush.msra.mxu0 0.0
    %658 = vmatpush.msra.mxu0 0.0
    %v659 = vand.u32 %v610, 4294901760
    %v660 = vsub.f32 %v610, %v659
    %v661 = vand.u32 %v660, 4294901760
    %v662 = vsub.f32 %v660, %v661
    %v663 = vand.u32 %v662, 4294901760
    %664 = vmatpush.msra.mxu0 %v663
    %v665 = vand.u32 %v609, 4294901760
    %v666 = vsub.f32 %v609, %v665
    %v667 = vand.u32 %v666, 4294901760
    %v668 = vsub.f32 %v666, %v667
    %v669 = vand.u32 %v668, 4294901760
    %670 = vmatpush.msra.mxu0 %v669
    %v671 = vand.u32 %v608, 4294901760
    %v672 = vsub.f32 %v608, %v671
    %v673 = vand.u32 %v672, 4294901760
    %v674 = vsub.f32 %v672, %v673
    %v675 = vand.u32 %v674, 4294901760
    %676 = vmatpush.msra.mxu0 %v675
    %v677 = vand.u32 %v607, 4294901760
    %v678 = vsub.f32 %v607, %v677
    %v679 = vand.u32 %v678, 4294901760
    %v680 = vsub.f32 %v678, %v679
    %v681 = vand.u32 %v680, 4294901760
    %682 = vmatpush.msra.mxu0 %v681
    %v683 = vand.u32 %v616, 4294901760
    %684 = vmatmul.f32.gmra.mxu0 %v683
    %v685 = vpop.f32.mrf.mxu0
    %v686 = vadd.f32 %v645, %v685
    %687 = vdwg.mxu0
    %688 = vmatpush.msra.mxu0 0.0
    %689 = vmatpush.msra.mxu0 0.0
    %690 = vmatpush.msra.mxu0 0.0
    %691 = vmatpush.msra.mxu0 0.0
    %692 = vmatpush.msra.mxu0 0.0
    %693 = vmatpush.msra.mxu0 0.0
    %694 = vmatpush.msra.mxu0 0.0
    %695 = vmatpush.msra.mxu0 0.0
    %696 = vmatpush.msra.mxu0 0.0
    %697 = vmatpush.msra.mxu0 0.0
    %698 = vmatpush.msra.mxu0 0.0
    %699 = vmatpush.msra.mxu0 0.0
    %v700 = vand.u32 %v610, 4294901760
    %v701 = vsub.f32 %v610, %v700
    %702 = vmatpush.msra.mxu0 %v701
    %v703 = vand.u32 %v609, 4294901760
    %v704 = vsub.f32 %v609, %v703
    %705 = vmatpush.msra.mxu0 %v704
    %v706 = vand.u32 %v608, 4294901760
    %v707 = vsub.f32 %v608, %v706
    %708 = vmatpush.msra.mxu0 %v707
    %v709 = vand.u32 %v607, 4294901760
    %v710 = vsub.f32 %v607, %v709
    %711 = vmatpush.msra.mxu0 %v710
    %v712 = vand.u32 %v616, 4294901760
    %v713 = vsub.f32 %v616, %v712
    %714 = vmatmul.f32.gmra.mxu0 %v713
    %v715 = vpop.f32.mrf.mxu0
    %v716 = vadd.f32 %v686, %v715
    %717 = vdwg.mxu0
    %718 = vmatpush.msra.mxu0 0.0
    %719 = vmatpush.msra.mxu0 0.0
    %720 = vmatpush.msra.mxu0 0.0
    %721 = vmatpush.msra.mxu0 0.0
    %722 = vmatpush.msra.mxu0 0.0
    %723 = vmatpush.msra.mxu0 0.0
    %724 = vmatpush.msra.mxu0 0.0
    %725 = vmatpush.msra.mxu0 0.0
    %726 = vmatpush.msra.mxu0 0.0
    %727 = vmatpush.msra.mxu0 0.0
    %728 = vmatpush.msra.mxu0 0.0
    %729 = vmatpush.msra.mxu0 0.0
    %v730 = vand.u32 %v610, 4294901760
    %731 = vmatpush.msra.mxu0 %v730
    %v732 = vand.u32 %v609, 4294901760
    %733 = vmatpush.msra.mxu0 %v732
    %v734 = vand.u32 %v608, 4294901760
    %735 = vmatpush.msra.mxu0 %v734
    %v736 = vand.u32 %v607, 4294901760
    %737 = vmatpush.msra.mxu0 %v736
    %v738 = vand.u32 %v616, 4294901760
    %v739 = vsub.f32 %v616, %v738
    %v740 = vand.u32 %v739, 4294901760
    %741 = vmatmul.f32.gmra.mxu0 %v740
    %v742 = vpop.f32.mrf.mxu0
    %v743 = vadd.f32 %v716, %v742
    %744 = vdwg.mxu0
    %745 = vmatpush.msra.mxu0 0.0
    %746 = vmatpush.msra.mxu0 0.0
    %747 = vmatpush.msra.mxu0 0.0
    %748 = vmatpush.msra.mxu0 0.0
    %749 = vmatpush.msra.mxu0 0.0
    %750 = vmatpush.msra.mxu0 0.0
    %751 = vmatpush.msra.mxu0 0.0
    %752 = vmatpush.msra.mxu0 0.0
    %753 = vmatpush.msra.mxu0 0.0
    %754 = vmatpush.msra.mxu0 0.0
    %755 = vmatpush.msra.mxu0 0.0
    %756 = vmatpush.msra.mxu0 0.0
    %v757 = vand.u32 %v610, 4294901760
    %v758 = vsub.f32 %v610, %v757
    %v759 = vand.u32 %v758, 4294901760
    %760 = vmatpush.msra.mxu0 %v759
    %v761 = vand.u32 %v609, 4294901760
    %v762 = vsub.f32 %v609, %v761
    %v763 = vand.u32 %v762, 4294901760
    %764 = vmatpush.msra.mxu0 %v763
    %v765 = vand.u32 %v608, 4294901760
    %v766 = vsub.f32 %v608, %v765
    %v767 = vand.u32 %v766, 4294901760
    %768 = vmatpush.msra.mxu0 %v767
    %v769 = vand.u32 %v607, 4294901760
    %v770 = vsub.f32 %v607, %v769
    %v771 = vand.u32 %v770, 4294901760
    %772 = vmatpush.msra.mxu0 %v771
    %v773 = vand.u32 %v616, 4294901760
    %774 = vmatmul.f32.gmra.mxu0 %v773
    %v775 = vpop.f32.mrf.mxu0
    %v776 = vadd.f32 %v743, %v775
    %777 = vdwg.mxu0
    %778 = vmatpush.msra.mxu0 0.0
    %779 = vmatpush.msra.mxu0 0.0
    %780 = vmatpush.msra.mxu0 0.0
    %781 = vmatpush.msra.mxu0 0.0
    %782 = vmatpush.msra.mxu0 0.0
    %783 = vmatpush.msra.mxu0 0.0
    %784 = vmatpush.msra.mxu0 0.0
    %785 = vmatpush.msra.mxu0 0.0
    %786 = vmatpush.msra.mxu0 0.0
    %787 = vmatpush.msra.mxu0 0.0
    %788 = vmatpush.msra.mxu0 0.0
    %789 = vmatpush.msra.mxu0 0.0
    %v790 = vand.u32 %v610, 4294901760
    %791 = vmatpush.msra.mxu0 %v790
    %v792 = vand.u32 %v609, 4294901760
    %793 = vmatpush.msra.mxu0 %v792
    %v794 = vand.u32 %v608, 4294901760
    %795 = vmatpush.msra.mxu0 %v794
    %v796 = vand.u32 %v607, 4294901760
    %797 = vmatpush.msra.mxu0 %v796
    %v798 = vand.u32 %v616, 4294901760
    %799 = vmatmul.f32.gmra.mxu0 %v798
    %v800 = vpop.f32.mrf.mxu0
    %v801 = vadd.f32 %v776, %v800
    %802 = vdwg.mxu0
    %v803 = vmax.f32 %v801, 0.0
    %v804 = vld [vmem:[#allocation11] sm:$0xff]
    %v805 = vld [vmem:[#allocation11 + $0x8] sm:$0xff]
    %v806 = vld [vmem:[#allocation11 + $0x10] sm:$0xff]
    %v807 = vld [vmem:[#allocation11 + $0x18] sm:$0xff]
    %v808 = vld [vmem:[%s11] sm:$0x1]
    %v810 = vperm.slane %v808, 0
    %v813 = vsel %vm158, %v803, 0
    %815 = vmatpush.msra.mxu0 0.0
    %816 = vmatpush.msra.mxu0 0.0
    %817 = vmatpush.msra.mxu0 0.0
    %818 = vmatpush.msra.mxu0 0.0
    %819 = vmatpush.msra.mxu0 0.0
    %820 = vmatpush.msra.mxu0 0.0
    %821 = vmatpush.msra.mxu0 0.0
    %822 = vmatpush.msra.mxu0 0.0
    %823 = vmatpush.msra.mxu0 0.0
    %824 = vmatpush.msra.mxu0 0.0
    %825 = vmatpush.msra.mxu0 0.0
    %826 = vmatpush.msra.mxu0 0.0
    %v827 = vand.u32 %v807, 4294901760
    %828 = vmatpush.msra.mxu0 %v827
    %v829 = vand.u32 %v806, 4294901760
    %830 = vmatpush.msra.mxu0 %v829
    %v831 = vand.u32 %v805, 4294901760
    %832 = vmatpush.msra.mxu0 %v831
    %v833 = vand.u32 %v804, 4294901760
    %834 = vmatpush.msra.mxu0 %v833
    %v835 = vand.u32 %v813, 4294901760
    %v836 = vsub.f32 %v813, %v835
    %v837 = vand.u32 %v836, 4294901760
    %v838 = vsub.f32 %v836, %v837
    %v839 = vand.u32 %v838, 4294901760
    %840 = vmatmul.f32.gmra.mxu0 %v839
    %v841 = vpop.f32.mrf.mxu0
    %v842 = vadd.f32 %v810, %v841
    %843 = vdwg.mxu0
    %844 = vmatpush.msra.mxu0 0.0
    %845 = vmatpush.msra.mxu0 0.0
    %846 = vmatpush.msra.mxu0 0.0
    %847 = vmatpush.msra.mxu0 0.0
    %848 = vmatpush.msra.mxu0 0.0
    %849 = vmatpush.msra.mxu0 0.0
    %850 = vmatpush.msra.mxu0 0.0
    %851 = vmatpush.msra.mxu0 0.0
    %852 = vmatpush.msra.mxu0 0.0
    %853 = vmatpush.msra.mxu0 0.0
    %854 = vmatpush.msra.mxu0 0.0
    %855 = vmatpush.msra.mxu0 0.0
    %v856 = vand.u32 %v807, 4294901760
    %v857 = vsub.f32 %v807, %v856
    %v858 = vand.u32 %v857, 4294901760
    %v859 = vsub.f32 %v857, %v858
    %v860 = vand.u32 %v859, 4294901760
    %861 = vmatpush.msra.mxu0 %v860
    %v862 = vand.u32 %v806, 4294901760
    %v863 = vsub.f32 %v806, %v862
    %v864 = vand.u32 %v863, 4294901760
    %v865 = vsub.f32 %v863, %v864
    %v866 = vand.u32 %v865, 4294901760
    %867 = vmatpush.msra.mxu0 %v866
    %v868 = vand.u32 %v805, 4294901760
    %v869 = vsub.f32 %v805, %v868
    %v870 = vand.u32 %v869, 4294901760
    %v871 = vsub.f32 %v869, %v870
    %v872 = vand.u32 %v871, 4294901760
    %873 = vmatpush.msra.mxu0 %v872
    %v874 = vand.u32 %v804, 4294901760
    %v875 = vsub.f32 %v804, %v874
    %v876 = vand.u32 %v875, 4294901760
    %v877 = vsub.f32 %v875, %v876
    %v878 = vand.u32 %v877, 4294901760
    %879 = vmatpush.msra.mxu0 %v878
    %v880 = vand.u32 %v813, 4294901760
    %881 = vmatmul.f32.gmra.mxu0 %v880
    %v882 = vpop.f32.mrf.mxu0
    %v883 = vadd.f32 %v842, %v882
    %884 = vdwg.mxu0
    %885 = vmatpush.msra.mxu0 0.0
    %886 = vmatpush.msra.mxu0 0.0
    %887 = vmatpush.msra.mxu0 0.0
    %888 = vmatpush.msra.mxu0 0.0
    %889 = vmatpush.msra.mxu0 0.0
    %890 = vmatpush.msra.mxu0 0.0
    %891 = vmatpush.msra.mxu0 0.0
    %892 = vmatpush.msra.mxu0 0.0
    %893 = vmatpush.msra.mxu0 0.0
    %894 = vmatpush.msra.mxu0 0.0
    %895 = vmatpush.msra.mxu0 0.0
    %896 = vmatpush.msra.mxu0 0.0
    %v897 = vand.u32 %v807, 4294901760
    %v898 = vsub.f32 %v807, %v897
    %899 = vmatpush.msra.mxu0 %v898
    %v900 = vand.u32 %v806, 4294901760
    %v901 = vsub.f32 %v806, %v900
    %902 = vmatpush.msra.mxu0 %v901
    %v903 = vand.u32 %v805, 4294901760
    %v904 = vsub.f32 %v805, %v903
    %905 = vmatpush.msra.mxu0 %v904
    %v906 = vand.u32 %v804, 4294901760
    %v907 = vsub.f32 %v804, %v906
    %908 = vmatpush.msra.mxu0 %v907
    %v909 = vand.u32 %v813, 4294901760
    %v910 = vsub.f32 %v813, %v909
    %911 = vmatmul.f32.gmra.mxu0 %v910
    %v912 = vpop.f32.mrf.mxu0
    %v913 = vadd.f32 %v883, %v912
    %914 = vdwg.mxu0
    %915 = vmatpush.msra.mxu0 0.0
    %916 = vmatpush.msra.mxu0 0.0
    %917 = vmatpush.msra.mxu0 0.0
    %918 = vmatpush.msra.mxu0 0.0
    %919 = vmatpush.msra.mxu0 0.0
    %920 = vmatpush.msra.mxu0 0.0
    %921 = vmatpush.msra.mxu0 0.0
    %922 = vmatpush.msra.mxu0 0.0
    %923 = vmatpush.msra.mxu0 0.0
    %924 = vmatpush.msra.mxu0 0.0
    %925 = vmatpush.msra.mxu0 0.0
    %926 = vmatpush.msra.mxu0 0.0
    %v927 = vand.u32 %v807, 4294901760
    %928 = vmatpush.msra.mxu0 %v927
    %v929 = vand.u32 %v806, 4294901760
    %930 = vmatpush.msra.mxu0 %v929
    %v931 = vand.u32 %v805, 4294901760
    %932 = vmatpush.msra.mxu0 %v931
    %v933 = vand.u32 %v804, 4294901760
    %934 = vmatpush.msra.mxu0 %v933
    %v935 = vand.u32 %v813, 4294901760
    %v936 = vsub.f32 %v813, %v935
    %v937 = vand.u32 %v936, 4294901760
    %938 = vmatmul.f32.gmra.mxu0 %v937
    %v939 = vpop.f32.mrf.mxu0
    %v940 = vadd.f32 %v913, %v939
    %941 = vdwg.mxu0
    %942 = vmatpush.msra.mxu0 0.0
    %943 = vmatpush.msra.mxu0 0.0
    %944 = vmatpush.msra.mxu0 0.0
    %945 = vmatpush.msra.mxu0 0.0
    %946 = vmatpush.msra.mxu0 0.0
    %947 = vmatpush.msra.mxu0 0.0
    %948 = vmatpush.msra.mxu0 0.0
    %949 = vmatpush.msra.mxu0 0.0
    %950 = vmatpush.msra.mxu0 0.0
    %951 = vmatpush.msra.mxu0 0.0
    %952 = vmatpush.msra.mxu0 0.0
    %953 = vmatpush.msra.mxu0 0.0
    %v954 = vand.u32 %v807, 4294901760
    %v955 = vsub.f32 %v807, %v954
    %v956 = vand.u32 %v955, 4294901760
    %957 = vmatpush.msra.mxu0 %v956
    %v958 = vand.u32 %v806, 4294901760
    %v959 = vsub.f32 %v806, %v958
    %v960 = vand.u32 %v959, 4294901760
    %961 = vmatpush.msra.mxu0 %v960
    %v962 = vand.u32 %v805, 4294901760
    %v963 = vsub.f32 %v805, %v962
    %v964 = vand.u32 %v963, 4294901760
    %965 = vmatpush.msra.mxu0 %v964
    %v966 = vand.u32 %v804, 4294901760
    %v967 = vsub.f32 %v804, %v966
    %v968 = vand.u32 %v967, 4294901760
    %969 = vmatpush.msra.mxu0 %v968
    %v970 = vand.u32 %v813, 4294901760
    %971 = vmatmul.f32.gmra.mxu0 %v970
    %v972 = vpop.f32.mrf.mxu0
    %v973 = vadd.f32 %v940, %v972
    %974 = vdwg.mxu0
    %975 = vmatpush.msra.mxu0 0.0
    %976 = vmatpush.msra.mxu0 0.0
    %977 = vmatpush.msra.mxu0 0.0
    %978 = vmatpush.msra.mxu0 0.0
    %979 = vmatpush.msra.mxu0 0.0
    %980 = vmatpush.msra.mxu0 0.0
    %981 = vmatpush.msra.mxu0 0.0
    %982 = vmatpush.msra.mxu0 0.0
    %983 = vmatpush.msra.mxu0 0.0
    %984 = vmatpush.msra.mxu0 0.0
    %985 = vmatpush.msra.mxu0 0.0
    %986 = vmatpush.msra.mxu0 0.0
    %v987 = vand.u32 %v807, 4294901760
    %988 = vmatpush.msra.mxu0 %v987
    %v989 = vand.u32 %v806, 4294901760
    %990 = vmatpush.msra.mxu0 %v989
    %v991 = vand.u32 %v805, 4294901760
    %992 = vmatpush.msra.mxu0 %v991
    %v993 = vand.u32 %v804, 4294901760
    %994 = vmatpush.msra.mxu0 %v993
    %v995 = vand.u32 %v813, 4294901760
    %996 = vmatmul.f32.gmra.mxu0 %v995
    %v997 = vpop.f32.mrf.mxu0
    %v998 = vadd.f32 %v973, %v997
    %999 = vdwg.mxu0
    %vm1000 = vcmask 254976
    %1001 = vst.msk [vmem:[#allocation12] sm:$0x3] %vm1000, %v998
    // Predicated region
    $region70: #{tpu_custom_call.1} parent=1 // pred_check
      _
    $region71: #{tpu_custom_call.1} parent=1 // pred_check_branch
      %1003 = sbr.rel (0) target = $region73
    $region72: #{tpu_custom_call.1} parent=1 // pred_region
      %1005 = vsyncadd [#allocation5], 0
      %s1007 = sshll.u32 [#allocation12], 4
      %s1008 = int_to_ptr.vmem [resolvable:$true] %s1007
      %s1009 = sshll.u32 %s12, 4
      %s1010 = int_to_ptr.hbm [resolvable:$true] %s1009
      %1012 = dma.vmem_to_hbm [thread:$0]  %s1008, 32, %s1010, [#allocation5]
    $region73: #{tpu_custom_call.1} parent=1 // pred_fallthru
      _
    // Predicated region
    $region74: #{tpu_custom_call.1} parent=1 // pred_check
      _
    $region75: #{tpu_custom_call.1} parent=1 // pred_check_branch
      %1014 = sbr.rel (0) target = $region77
    $region76: #{tpu_custom_call.1} parent=1 // pred_region
      %1016 = dma.done [#allocation5], 32
    $region77: #{tpu_custom_call.1} parent=1 // pred_fallthru
      _
    %1017 = vsyncpa [#allocation4], 1
    %1018 = vsyncpa [#allocation7], 1
    %1019 = vsyncpa [#allocation10], 1
    %1020 = vsyncpa [#allocation5], 1

// kernel: tpu_custom_call.1
$region0: #{tpu_custom_call.1}
  #allocation0 [shape = 'u32[]', space=smem, size = 0x4, offset = 0x4, fixed_abs, tag = 'smem constant byte address 0x4 - core index']
  #allocation1 [shape = 'u32[72,128]{1,0:T(1,128)}', space=vmem, size = 0x9000, scoped, tag = 'internal scratch']
  #allocation2 [shape = 'f32[1,1]{1,0:T(1,128)S(1)}', space=vmem, size = 0x200, scoped, tag = 'scoped memory for tpu_custom_call.1']
  %s0 = inlined_call_operand.hbm [shape: f32[2,8,32], index: 0, kind: input, shape index: {}]
  %s1 = inlined_call_operand.vmem [shape: f32[2,1,8], index: 1, kind: input, shape index: {}]
  %s2 = inlined_call_operand.hbm [shape: bf16[32,256], index: 2, kind: input, shape index: {}]
  %s3 = inlined_call_operand.vmem [shape: f32[1,256], index: 3, kind: input, shape index: {}]
  %s4 = inlined_call_operand.vmem [shape: f32[1,128], index: 4, kind: input, shape index: {}]
  %s5 = inlined_call_operand.<no memory space> [shape: f32[1,1], index: 5, kind: input, shape index: {}]
  %s6 = inlined_call_operand.hbm [shape: f32[32,32], index: 6, kind: input, shape index: {}]
  %s7 = inlined_call_operand.vmem [shape: f32[1,32], index: 7, kind: input, shape index: {}]
  %s8 = inlined_call_operand.hbm [shape: f32[32,32], index: 8, kind: input, shape index: {}]
  %s9 = inlined_call_operand.vmem [shape: f32[1,32], index: 9, kind: input, shape index: {}]
  %s10 = inlined_call_operand.hbm [shape: f32[32,32], index: 10, kind: input, shape index: {}]
  %s11 = inlined_call_operand.vmem [shape: f32[1,32], index: 11, kind: input, shape index: {}]
  %s12 = inlined_call_operand.hbm [shape: f32[1,2,32], index: 12, kind: output, shape index: {}]
  %s13 = sld [smem:[#allocation0]]
  $region78: #{tpu_custom_call.1} parent=0
    _
  %s15 = ssub.s32 1, %s13
  %s16 = scalar_select 0, %s15, %s13
  %v17 = vstv %s5
  %18 = vst [vmem:[#allocation2] sm:$0x1] %v17
  $region1: #{tpu_custom_call.1} parent=0
    #allocation3 [shape = 'u8[8192]{0}', space=vmem, size = 0x2000, scoped, tag = 'input window, operand 0, single buffered']
    #allocation4 [shape = 's32[1]{0}', space=sflag, size = 0x4, scoped, tag = 'scoped memory for tpu_custom_call.1']
    #allocation5 [shape = 's32[1]{0}', space=sflag, size = 0x4, scoped, tag = 'scoped memory for tpu_custom_call.1']
    #allocation6 [shape = 'u8[16384]{0}', space=vmem, size = 0x4000, scoped, tag = 'input window, operand 2, single buffered']
    #allocation7 [shape = 's32[1]{0}', space=sflag, size = 0x4, scoped, tag = 'scoped memory for tpu_custom_call.1']
    #allocation8 [shape = 'u8[16384]{0}', space=vmem, size = 0x4000, scoped, tag = 'input window, operand 6, single buffered']
    #allocation9 [shape = 'u8[16384]{0}', space=vmem, size = 0x4000, scoped, tag = 'input window, operand 8, single buffered']
    #allocation10 [shape = 's32[1]{0}', space=sflag, size = 0x4, scoped, tag = 'scoped memory for tpu_custom_call.1']
    #allocation11 [shape = 'u8[16384]{0}', space=vmem, size = 0x4000, scoped, tag = 'input window, operand 10, single buffered']
    #allocation12 [shape = 'u8[1024]{0}', space=vmem, size = 0x400, scoped, tag = 'output window, operand 0, single buffered']
    %19 = vsyncpa [#allocation4], 0
    %20 = vsyncpa [#allocation7], 0
    %21 = vsyncpa [#allocation10], 0
    %22 = vsyncpa [#allocation5], 0
    // Predicated region
    $region2: #{tpu_custom_call.1} parent=1 // pred_check
      _
    $region3: #{tpu_custom_call.1} parent=1 // pred_check_branch
      %24 = sbr.rel (0) target = $region5
    $region4: #{tpu_custom_call.1} parent=1 // pred_region
      %26 = vsyncadd [#allocation4], 0
      %s27 = sshll.u32 %s0, 4
      %s28 = int_to_ptr.hbm [resolvable:$true] %s27
      %s29 = sshll.u32 [#allocation3], 4
      %s30 = int_to_ptr.vmem [resolvable:$true] %s29
      %35 = dma.hbm_to_vmem [thread:$0]  %s28, 256, %s30, [#allocation4], 128, 128, 8
    $region5: #{tpu_custom_call.1} parent=1 // pred_fallthru
      _
    // Predicated region
    $region6: #{tpu_custom_call.1} parent=1 // pred_check
      _
    $region7: #{tpu_custom_call.1} parent=1 // pred_check_branch
      %37 = sbr.rel (0) target = $region9
    $region8: #{tpu_custom_call.1} parent=1 // pred_region
      _
    $region9: #{tpu_custom_call.1} parent=1 // pred_fallthru
      _
    // Predicated region
    $region10: #{tpu_custom_call.1} parent=1 // pred_check
      _
    $region11: #{tpu_custom_call.1} parent=1 // pred_check_branch
      %39 = sbr.rel (0) target = $region13
    $region12: #{tpu_custom_call.1} parent=1 // pred_region
      %41 = vsyncadd [#allocation7], 0
      %s42 = sshll.u32 %s2, 4
      %s43 = int_to_ptr.hbm [resolvable:$true] %s42
      %s44 = sshll.u32 [#allocation6], 4
      %s45 = int_to_ptr.vmem [resolvable:$true] %s44
      %50 = dma.hbm_to_vmem [thread:$0]  %s43, 512, %s45, [#allocation7], 128, 128, 8
    $region13: #{tpu_custom_call.1} parent=1 // pred_fallthru
      _
    // Predicated region
    $region14: #{tpu_custom_call.1} parent=1 // pred_check
      _
    $region15: #{tpu_custom_call.1} parent=1 // pred_check_branch
      %52 = sbr.rel (0) target = $region17
    $region16: #{tpu_custom_call.1} parent=1 // pred_region
      _
    $region17: #{tpu_custom_call.1} parent=1 // pred_fallthru
      _
    // Predicated region
    $region18: #{tpu_custom_call.1} parent=1 // pred_check
      _
    $region19: #{tpu_custom_call.1} parent=1 // pred_check_branch
      %54 = sbr.rel (0) target = $region21
    $region20: #{tpu_custom_call.1} parent=1 // pred_region
      _
    $region21: #{tpu_custom_call.1} parent=1 // pred_fallthru
      _
    // Predicated region
    $region22: #{tpu_custom_call.1} parent=1 // pred_check
      _
    $region23: #{tpu_custom_call.1} parent=1 // pred_check_branch
      %56 = sbr.rel (0) target = $region25
    $region24: #{tpu_custom_call.1} parent=1 // pred_region
      _
    $region25: #{tpu_custom_call.1} parent=1 // pred_fallthru
      _
    // Predicated region
    $region26: #{tpu_custom_call.1} parent=1 // pred_check
      _
    $region27: #{tpu_custom_call.1} parent=1 // pred_check_branch
      %58 = sbr.rel (0) target = $region29
    $region28: #{tpu_custom_call.1} parent=1 // pred_region
      %60 = vsyncadd [#allocation7], 0
      %s61 = sshll.u32 %s6, 4
      %s62 = int_to_ptr.hbm [resolvable:$true] %s61
      %s63 = sshll.u32 [#allocation8], 4
      %s64 = int_to_ptr.vmem [resolvable:$true] %s63
      %69 = dma.hbm_to_vmem [thread:$0]  %s62, 512, %s64, [#allocation7], 128, 128, 8
    $region29: #{tpu_custom_call.1} parent=1 // pred_fallthru
      _
    // Predicated region
    $region30: #{tpu_custom_call.1} parent=1 // pred_check
      _
    $region31: #{tpu_custom_call.1} parent=1 // pred_check_branch
      %71 = sbr.rel (0) target = $region33
    $region32: #{tpu_custom_call.1} parent=1 // pred_region
      _
    $region33: #{tpu_custom_call.1} parent=1 // pred_fallthru
      _
    // Predicated region
    $region34: #{tpu_custom_call.1} parent=1 // pred_check
      _
    $region35: #{tpu_custom_call.1} parent=1 // pred_check_branch
      %73 = sbr.rel (0) target = $region37
    $region36: #{tpu_custom_call.1} parent=1 // pred_region
      %75 = vsyncadd [#allocation10], 0
      %s76 = sshll.u32 %s8, 4
      %s77 = int_to_ptr.hbm [resolvable:$true] %s76
      %s78 = sshll.u32 [#allocation9], 4
      %s79 = int_to_ptr.vmem [resolvable:$true] %s78
      %84 = dma.hbm_to_vmem [thread:$0]  %s77, 512, %s79, [#allocation10], 128, 128, 8
    $region37: #{tpu_custom_call.1} parent=1 // pred_fallthru
      _
    // Predicated region
    $region38: #{tpu_custom_call.1} parent=1 // pred_check
      _
    $region39: #{tpu_custom_call.1} parent=1 // pred_check_branch
      %86 = sbr.rel (0) target = $region41
    $region40: #{tpu_custom_call.1} parent=1 // pred_region
      _
    $region41: #{tpu_custom_call.1} parent=1 // pred_fallthru
      _
    // Predicated region
    $region42: #{tpu_custom_call.1} parent=1 // pred_check
      _
    $region43: #{tpu_custom_call.1} parent=1 // pred_check_branch
      %88 = sbr.rel (0) target = $region45
    $region44: #{tpu_custom_call.1} parent=1 // pred_region
      %90 = vsyncadd [#allocation10], 0
      %s91 = sshll.u32 %s10, 4
      %s92 = int_to_ptr.hbm [resolvable:$true] %s91
      %s93 = sshll.u32 [#allocation11], 4
      %s94 = int_to_ptr.vmem [resolvable:$true] %s93
      %99 = dma.hbm_to_vmem [thread:$0]  %s92, 512, %s94, [#allocation10], 128, 128, 8
    $region45: #{tpu_custom_call.1} parent=1 // pred_fallthru
      _
    // Predicated region
    $region46: #{tpu_custom_call.1} parent=1 // pred_check
      _
    $region47: #{tpu_custom_call.1} parent=1 // pred_check_branch
      %101 = sbr.rel (0) target = $region49
    $region48: #{tpu_custom_call.1} parent=1 // pred_region
      _
    $region49: #{tpu_custom_call.1} parent=1 // pred_fallthru
      _
    // Predicated region
    $region50: #{tpu_custom_call.1} parent=1 // pred_check
      _
    $region51: #{tpu_custom_call.1} parent=1 // pred_check_branch
      %103 = sbr.rel (0) target = $region53
    $region52: #{tpu_custom_call.1} parent=1 // pred_region
      %105 = dma.done [#allocation4], 256
    $region53: #{tpu_custom_call.1} parent=1 // pred_fallthru
      _
    // Predicated region
    $region54: #{tpu_custom_call.1} parent=1 // pred_check
      _
    $region55: #{tpu_custom_call.1} parent=1 // pred_check_branch
      %107 = sbr.rel (0) target = $region57
    $region56: #{tpu_custom_call.1} parent=1 // pred_region
      %109 = dma.done [#allocation7], 512
    $region57: #{tpu_custom_call.1} parent=1 // pred_fallthru
      _
    // Predicated region
    $region58: #{tpu_custom_call.1} parent=1 // pred_check
      _
    $region59: #{tpu_custom_call.1} parent=1 // pred_check_branch
      %111 = sbr.rel (0) target = $region61
    $region60: #{tpu_custom_call.1} parent=1 // pred_region
      %113 = dma.done [#allocation7], 512
    $region61: #{tpu_custom_call.1} parent=1 // pred_fallthru
      _
    // Predicated region
    $region62: #{tpu_custom_call.1} parent=1 // pred_check
      _
    $region63: #{tpu_custom_call.1} parent=1 // pred_check_branch
      %115 = sbr.rel (0) target = $region65
    $region64: #{tpu_custom_call.1} parent=1 // pred_region
      %117 = dma.done [#allocation10], 512
    $region65: #{tpu_custom_call.1} parent=1 // pred_fallthru
      _
    // Predicated region
    $region66: #{tpu_custom_call.1} parent=1 // pred_check
      _
    $region67: #{tpu_custom_call.1} parent=1 // pred_check_branch
      %119 = sbr.rel (0) target = $region69
    $region68: #{tpu_custom_call.1} parent=1 // pred_region
      %121 = dma.done [#allocation10], 512
    $region69: #{tpu_custom_call.1} parent=1 // pred_fallthru
      _
    %v123 = vld [vmem:[#allocation3] sm:$0xff]
    %v124 = vld [vmem:[#allocation3 + $0x8] sm:$0xff]
    %v125 = vld [vmem:[%s1] sm:$0x1]
    %v126 = vld [vmem:[%s1 + $0x1] sm:$0x1]
    %v127 = vpack.c.bf16 %v124, %v123
    %v128 = vld [vmem:[#allocation6] sm:$0xff]
    %v129 = vld [vmem:[#allocation6 + $0x8] sm:$0xff]
    %v130 = vld [vmem:[#allocation6 + $0x10] sm:$0xff]
    %v131 = vld [vmem:[#allocation6 + $0x18] sm:$0xff]
    %v132 = vld [vmem:[%s3] sm:$0x3]
    %v134 = vperm.slane %v132, 0
    %v135 = vperm.slane %v132, 1
    %v142 = vunpack.c.l.b16 %v128
    %v143 = vunpack.c.h.b16 %v128
    %v144 = vunpack.c.l.b16 %v129
    %v145 = vunpack.c.h.b16 %v129
    %v146 = vunpack.c.l.b16 %v130
    %v147 = vunpack.c.h.b16 %v130
    %v148 = vunpack.c.l.b16 %v131
    %v149 = vunpack.c.h.b16 %v131
    %v150 = vpack.c.b16 %v144, %v142
    %v151 = vpack.c.b16 %v145, %v143
    %v152 = vpack.c.b16 %v148, %v146
    %v153 = vpack.c.b16 %v149, %v147
    %vm158 = vcmask 261120
    %v160 = vsel %vm158, %v127, 0
    %162 = vmatpush.bf16.msra.mxu0 0
    %163 = vmatpush.bf16.msra.mxu0 0
    %164 = vmatpush.bf16.msra.mxu0 0
    %165 = vmatpush.bf16.msra.mxu0 0
    %166 = vmatpush.bf16.msra.mxu0 0
    %167 = vmatpush.bf16.msra.mxu0 0
    %168 = vmatpush.bf16.msra.mxu0 %v152
    %169 = vmatpush.bf16.msra.mxu0 %v150
    %170 = vmatmul.bf16.gmra.mxu0 %v160
    %v171 = vpop.f32.mrf.mxu0
    %v172 = vadd.f32 %v134, %v171
    %v173 = vpop.f32.mrf.mxu0
    %v174 = vadd.f32 %v134, %v173
    %175 = vdwg.mxu0
    %176 = vmatpush.bf16.msra.mxu0 0
    %177 = vmatpush.bf16.msra.mxu0 0
    %178 = vmatpush.bf16.msra.mxu0 0
    %179 = vmatpush.bf16.msra.mxu0 0
    %180 = vmatpush.bf16.msra.mxu0 0
    %181 = vmatpush.bf16.msra.mxu0 0
    %182 = vmatpush.bf16.msra.mxu0 %v153
    %183 = vmatpush.bf16.msra.mxu0 %v151
    %184 = vmatmul.bf16.gmra.mxu0 %v160
    %v185 = vpop.f32.mrf.mxu0
    %v186 = vadd.f32 %v135, %v185
    %v187 = vpop.f32.mrf.mxu0
    %v188 = vadd.f32 %v135, %v187
    %189 = vdwg.mxu0
    %v190 = vxor.u32 %v186, 2147483648
    %v191 = vxor.u32 %v188, 2147483648
    %v192 = vmul.f32 %v190, 1.442695
    %v193 = vpow.pop %v192
    %v194 = vmul.f32 %v191, 1.442695
    %v195 = vpow.pop %v194
    %v196 = vadd.f32 %v193, 1.0
    %v197 = vadd.f32 %v195, 1.0
    %v198 = vrcp.pop %v196
    %v199 = vmul.f32 %v196, %v198
    %v200 = vsub.f32 1.0, %v199
    %v201 = vmul.f32 %v198, %v200
    %v202 = vadd.f32 %v198, %v201
    %vm203 = vweird.f32 %v196
    %vm204 = vweird.f32 %v198
    %vm205 = vmor %vm203, %vm204
    %v206 = vsel %vm205, %v198, %v202
    %v207 = vand.u32 2147483647, %v196
    %vm208 = vcmp.eq.f32.partialorder %v207, 8.507059e+37
    %v209 = vand.u32 %v196, 2147483648
    %v210 = vor.u32 1.1754944e-38, %v209
    %v211 = vsel %vm208, %v210, %v206
    %v212 = vmul.f32 1.0, %v211
    %v213 = vrcp.pop %v197
    %v214 = vmul.f32 %v197, %v213
    %v215 = vsub.f32 1.0, %v214
    %v216 = vmul.f32 %v213, %v215
    %v217 = vadd.f32 %v213, %v216
    %vm218 = vweird.f32 %v197
    %vm219 = vweird.f32 %v213
    %vm220 = vmor %vm218, %vm219
    %v221 = vsel %vm220, %v213, %v217
    %v222 = vand.u32 2147483647, %v197
    %vm223 = vcmp.eq.f32.partialorder %v222, 8.507059e+37
    %v224 = vand.u32 %v197, 2147483648
    %v225 = vor.u32 1.1754944e-38, %v224
    %v226 = vsel %vm223, %v225, %v221
    %v227 = vmul.f32 1.0, %v226
    %v228 = vmul.f32 %v172, %v212
    %v229 = vmul.f32 %v174, %v227
    %v230 = vtanh.pop %v228
    %v231 = vtanh.pop %v229
    %v232 = vld [vmem:[%s4] sm:$0x1]
    %v234 = vperm.slane %v232, 0
    %v236 = vmul.f32 %v230, %v234
    %v237 = vmul.f32 %v231, %v234
    %238 = vadd.xlane.f32.xlu0 %v236
    %v239 = vpop.xlane.xlu0 %238
    %240 = vadd.xlane.f32.xlu0 %v237
    %v241 = vpop.xlane.xlu0 %240
    %v242 = vld [vmem:[#allocation2] sm:$0x1]
    %v244 = vperm.slane %v242, 0
    %245 = vset.pattern.permute.xlu0 0
    %246 = vperm.xlu0 %245, %v244
    %v247 = vpop.permute.xlu0 %246
    %v249 = vadd.f32 %v239, %v247
    %v250 = vadd.f32 %v241, %v247
    %vm251 = vcmp.gt.f32.partialorder %v125, 0.5
    %vm252 = vcmp.gt.f32.partialorder %v126, 0.5
    %v255 = vperm.slane %v249, 0
    %v256 = vperm.slane %v249, 1
    %v257 = vperm.slane %v249, 2
    %v258 = vperm.slane %v249, 3
    %v259 = vperm.slane %v249, 4
    %v260 = vperm.slane %v249, 5
    %v261 = vperm.slane %v249, 6
    %v262 = vperm.slane %v249, 7
    %v263 = vperm.slane %v250, 0
    %v264 = vperm.slane %v250, 1
    %v265 = vperm.slane %v250, 2
    %v266 = vperm.slane %v250, 3
    %v267 = vperm.slane %v250, 4
    %v268 = vperm.slane %v250, 5
    %v269 = vperm.slane %v250, 6
    %v270 = vperm.slane %v250, 7
    %271 = vst [vmem:[#allocation1] ss:$9 sm:$0xff] %v255
    %s272 = scalar_lea.vmem [#allocation1], 1
    %273 = vst [vmem:[%s272] ss:$9 sm:$0xff] %v256
    %s274 = scalar_lea.vmem [#allocation1], 2
    %275 = vst [vmem:[%s274] ss:$9 sm:$0xff] %v257
    %s276 = scalar_lea.vmem [#allocation1], 3
    %277 = vst [vmem:[%s276] ss:$9 sm:$0xff] %v258
    %s278 = scalar_lea.vmem [#allocation1], 4
    %279 = vst [vmem:[%s278] ss:$9 sm:$0xff] %v259
    %s280 = scalar_lea.vmem [#allocation1], 5
    %281 = vst [vmem:[%s280] ss:$9 sm:$0xff] %v260
    %s282 = scalar_lea.vmem [#allocation1], 6
    %283 = vst [vmem:[%s282] ss:$9 sm:$0xff] %v261
    %s284 = scalar_lea.vmem [#allocation1], 7
    %285 = vst [vmem:[%s284] ss:$9 sm:$0xff] %v262
    %v286 = vld [vmem:[#allocation1] sm:$0xff]
    %287 = vst [vmem:[#allocation1] ss:$9 sm:$0xff] %v263
    %288 = vst [vmem:[%s272] ss:$9 sm:$0xff] %v264
    %289 = vst [vmem:[%s274] ss:$9 sm:$0xff] %v265
    %290 = vst [vmem:[%s276] ss:$9 sm:$0xff] %v266
    %291 = vst [vmem:[%s278] ss:$9 sm:$0xff] %v267
    %292 = vst [vmem:[%s280] ss:$9 sm:$0xff] %v268
    %293 = vst [vmem:[%s282] ss:$9 sm:$0xff] %v269
    %294 = vst [vmem:[%s284] ss:$9 sm:$0xff] %v270
    %v295 = vld [vmem:[#allocation1] sm:$0xff]
    %296 = vset.pattern.permute.xlu0 0
    %297 = vperm.xlu0 %296, %v286
    %v298 = vpop.permute.xlu0 %297
    %299 = vset.pattern.permute.xlu0 0
    %300 = vperm.xlu0 %299, %v295
    %v301 = vpop.permute.xlu0 %300
    %v302 = vlaneseq
    %v303 = vand.u32 %v302, 127
    %v304 = vperm.slane %v298, %v303
    %v305 = vperm.slane %v301, %v303
    %v308 = vsel %vm251, -1e+09, %v304
    %v309 = vsel %vm252, -1e+09, %v305
    %312 = vst [vmem:[#allocation1] ss:$9 sm:$0xff] %v308
    %s313 = scalar_lea.vmem [#allocation1], 1
    %314 = vst [vmem:[%s313] ss:$9 sm:$0xff] %v309
    %v315 = vld [vmem:[#allocation1] sm:$0xff]
    %vm317 = vcmask 58368
    %v318 = vsel %vm317, %v315, -inf
    %319 = vmax.xlane.f32.xlu0 %v318
    %v320 = vpop.xlane.xlu0 %319
    %v322 = vperm.slane %v320, 0
    %v323 = vperm.slane %v320, 1
    %v326 = vsub.f32 %v308, %v322
    %v327 = vsub.f32 %v309, %v323
    %v328 = vmul.f32 %v326, 1.442695
    %v329 = vpow.pop %v328
    %v330 = vmul.f32 %v327, 1.442695
    %v331 = vpow.pop %v330
    %334 = vst [vmem:[#allocation1] ss:$9 sm:$0xff] %v329
    %s335 = scalar_lea.vmem [#allocation1], 1
    %336 = vst [vmem:[%s335] ss:$9 sm:$0xff] %v331
    %v337 = vld [vmem:[#allocation1] sm:$0xff]
    %v339 = vsel %vm317, %v337, 0.0
    %340 = vadd.xlane.f32.xlu0 %v339
    %v341 = vpop.xlane.xlu0 %340
    %v342 = vperm.slane %v329, 0
    %v343 = vlaneseq
    %v344 = vshrl.u32 %v343, 7
    %346 = vset.pattern.permute.xlu0 %v344
    %347 = vperm.xlu0 %346, %v342
    %v348 = vpop.permute.xlu0 %347
    %v349 = vperm.slane %v331, 0
    %v350 = vlaneseq
    %v351 = vshrl.u32 %v350, 7
    %353 = vset.pattern.permute.xlu0 %v351
    %354 = vperm.xlu0 %353, %v349
    %v355 = vpop.permute.xlu0 %354
    %v356 = vmul.f32 %v348, %v123
    %v357 = vmul.f32 %v355, %v124
    %v358 = vsel %vm158, %v356, 0.0
    %v359 = vrot.slane %v358, 4
    %v360 = vadd.f32 %v358, %v359
    %v361 = vrot.slane %v360, 2
    %v362 = vadd.f32 %v360, %v361
    %v363 = vrot.slane %v362, 1
    %v364 = vadd.f32 %v362, %v363
    %v365 = vsel %vm158, %v357, 0.0
    %v366 = vrot.slane %v365, 4
    %v367 = vadd.f32 %v365, %v366
    %v368 = vrot.slane %v367, 2
    %v369 = vadd.f32 %v367, %v368
    %v370 = vrot.slane %v369, 1
    %v371 = vadd.f32 %v369, %v370
    %v373 = vrot.slane %v341, 1
    %v376 = vrcp.pop %v341
    %v377 = vmul.f32 %v341, %v376
    %v378 = vsub.f32 1.0, %v377
    %v379 = vmul.f32 %v376, %v378
    %v380 = vadd.f32 %v376, %v379
    %vm381 = vweird.f32 %v341
    %vm382 = vweird.f32 %v376
    %vm383 = vmor %vm381, %vm382
    %v384 = vsel %vm383, %v376, %v380
    %v385 = vand.u32 2147483647, %v341
    %vm386 = vcmp.eq.f32.partialorder %v385, 8.507059e+37
    %v387 = vand.u32 %v341, 2147483648
    %v388 = vor.u32 1.1754944e-38, %v387
    %v389 = vsel %vm386, %v388, %v384
    %v390 = vmul.f32 %v364, %v389
    %v391 = vrcp.pop %v373
    %v392 = vmul.f32 %v373, %v391
    %v393 = vsub.f32 1.0, %v392
    %v394 = vmul.f32 %v391, %v393
    %v395 = vadd.f32 %v391, %v394
    %vm396 = vweird.f32 %v373
    %vm397 = vweird.f32 %v391
    %vm398 = vmor %vm396, %vm397
    %v399 = vsel %vm398, %v391, %v395
    %v400 = vand.u32 2147483647, %v373
    %vm401 = vcmp.eq.f32.partialorder %v400, 8.507059e+37
    %v402 = vand.u32 %v373, 2147483648
    %v403 = vor.u32 1.1754944e-38, %v402
    %v404 = vsel %vm401, %v403, %v399
    %v405 = vmul.f32 %v371, %v404
    %v406 = vld [vmem:[#allocation8] sm:$0xff]
    %v407 = vld [vmem:[#allocation8 + $0x8] sm:$0xff]
    %v408 = vld [vmem:[#allocation8 + $0x10] sm:$0xff]
    %v409 = vld [vmem:[#allocation8 + $0x18] sm:$0xff]
    %v410 = vld [vmem:[%s7] sm:$0x1]
    %v412 = vperm.slane %v410, 0
    %v416 = vrot.slane %v405, 7
    %vm417 = vcmask 1041409
    %v418 = vsel %vm417, %v416, %v390
    %v419 = vsel %vm158, %v418, 0
    %421 = vmatpush.msra.mxu0 0.0
    %422 = vmatpush.msra.mxu0 0.0
    %423 = vmatpush.msra.mxu0 0.0
    %424 = vmatpush.msra.mxu0 0.0
    %425 = vmatpush.msra.mxu0 0.0
    %426 = vmatpush.msra.mxu0 0.0
    %427 = vmatpush.msra.mxu0 0.0
    %428 = vmatpush.msra.mxu0 0.0
    %429 = vmatpush.msra.mxu0 0.0
    %430 = vmatpush.msra.mxu0 0.0
    %431 = vmatpush.msra.mxu0 0.0
    %432 = vmatpush.msra.mxu0 0.0
    %v433 = vand.u32 %v409, 4294901760
    %434 = vmatpush.msra.mxu0 %v433
    %v435 = vand.u32 %v408, 4294901760
    %436 = vmatpush.msra.mxu0 %v435
    %v437 = vand.u32 %v407, 4294901760
    %438 = vmatpush.msra.mxu0 %v437
    %v439 = vand.u32 %v406, 4294901760
    %440 = vmatpush.msra.mxu0 %v439
    %v441 = vand.u32 %v419, 4294901760
    %v442 = vsub.f32 %v419, %v441
    %v443 = vand.u32 %v442, 4294901760
    %v444 = vsub.f32 %v442, %v443
    %v445 = vand.u32 %v444, 4294901760
    %446 = vmatmul.f32.gmra.mxu0 %v445
    %v447 = vpop.f32.mrf.mxu0
    %v448 = vadd.f32 %v412, %v447
    %449 = vdwg.mxu0
    %450 = vmatpush.msra.mxu0 0.0
    %451 = vmatpush.msra.mxu0 0.0
    %452 = vmatpush.msra.mxu0 0.0
    %453 = vmatpush.msra.mxu0 0.0
    %454 = vmatpush.msra.mxu0 0.0
    %455 = vmatpush.msra.mxu0 0.0
    %456 = vmatpush.msra.mxu0 0.0
    %457 = vmatpush.msra.mxu0 0.0
    %458 = vmatpush.msra.mxu0 0.0
    %459 = vmatpush.msra.mxu0 0.0
    %460 = vmatpush.msra.mxu0 0.0
    %461 = vmatpush.msra.mxu0 0.0
    %v462 = vand.u32 %v409, 4294901760
    %v463 = vsub.f32 %v409, %v462
    %v464 = vand.u32 %v463, 4294901760
    %v465 = vsub.f32 %v463, %v464
    %v466 = vand.u32 %v465, 4294901760
    %467 = vmatpush.msra.mxu0 %v466
    %v468 = vand.u32 %v408, 4294901760
    %v469 = vsub.f32 %v408, %v468
    %v470 = vand.u32 %v469, 4294901760
    %v471 = vsub.f32 %v469, %v470
    %v472 = vand.u32 %v471, 4294901760
    %473 = vmatpush.msra.mxu0 %v472
    %v474 = vand.u32 %v407, 4294901760
    %v475 = vsub.f32 %v407, %v474
    %v476 = vand.u32 %v475, 4294901760
    %v477 = vsub.f32 %v475, %v476
    %v478 = vand.u32 %v477, 4294901760
    %479 = vmatpush.msra.mxu0 %v478
    %v480 = vand.u32 %v406, 4294901760
    %v481 = vsub.f32 %v406, %v480
    %v482 = vand.u32 %v481, 4294901760
    %v483 = vsub.f32 %v481, %v482
    %v484 = vand.u32 %v483, 4294901760
    %485 = vmatpush.msra.mxu0 %v484
    %v486 = vand.u32 %v419, 4294901760
    %487 = vmatmul.f32.gmra.mxu0 %v486
    %v488 = vpop.f32.mrf.mxu0
    %v489 = vadd.f32 %v448, %v488
    %490 = vdwg.mxu0
    %491 = vmatpush.msra.mxu0 0.0
    %492 = vmatpush.msra.mxu0 0.0
    %493 = vmatpush.msra.mxu0 0.0
    %494 = vmatpush.msra.mxu0 0.0
    %495 = vmatpush.msra.mxu0 0.0
    %496 = vmatpush.msra.mxu0 0.0
    %497 = vmatpush.msra.mxu0 0.0
    %498 = vmatpush.msra.mxu0 0.0
    %499 = vmatpush.msra.mxu0 0.0
    %500 = vmatpush.msra.mxu0 0.0
    %501 = vmatpush.msra.mxu0 0.0
    %502 = vmatpush.msra.mxu0 0.0
    %v503 = vand.u32 %v409, 4294901760
    %v504 = vsub.f32 %v409, %v503
    %505 = vmatpush.msra.mxu0 %v504
    %v506 = vand.u32 %v408, 4294901760
    %v507 = vsub.f32 %v408, %v506
    %508 = vmatpush.msra.mxu0 %v507
    %v509 = vand.u32 %v407, 4294901760
    %v510 = vsub.f32 %v407, %v509
    %511 = vmatpush.msra.mxu0 %v510
    %v512 = vand.u32 %v406, 4294901760
    %v513 = vsub.f32 %v406, %v512
    %514 = vmatpush.msra.mxu0 %v513
    %v515 = vand.u32 %v419, 4294901760
    %v516 = vsub.f32 %v419, %v515
    %517 = vmatmul.f32.gmra.mxu0 %v516
    %v518 = vpop.f32.mrf.mxu0
    %v519 = vadd.f32 %v489, %v518
    %520 = vdwg.mxu0
    %521 = vmatpush.msra.mxu0 0.0
    %522 = vmatpush.msra.mxu0 0.0
    %523 = vmatpush.msra.mxu0 0.0
    %524 = vmatpush.msra.mxu0 0.0
    %525 = vmatpush.msra.mxu0 0.0
    %526 = vmatpush.msra.mxu0 0.0
    %527 = vmatpush.msra.mxu0 0.0
    %528 = vmatpush.msra.mxu0 0.0
    %529 = vmatpush.msra.mxu0 0.0
    %530 = vmatpush.msra.mxu0 0.0
    %531 = vmatpush.msra.mxu0 0.0
    %532 = vmatpush.msra.mxu0 0.0
    %v533 = vand.u32 %v409, 4294901760
    %534 = vmatpush.msra.mxu0 %v533
    %v535 = vand.u32 %v408, 4294901760
    %536 = vmatpush.msra.mxu0 %v535
    %v537 = vand.u32 %v407, 4294901760
    %538 = vmatpush.msra.mxu0 %v537
    %v539 = vand.u32 %v406, 4294901760
    %540 = vmatpush.msra.mxu0 %v539
    %v541 = vand.u32 %v419, 4294901760
    %v542 = vsub.f32 %v419, %v541
    %v543 = vand.u32 %v542, 4294901760
    %544 = vmatmul.f32.gmra.mxu0 %v543
    %v545 = vpop.f32.mrf.mxu0
    %v546 = vadd.f32 %v519, %v545
    %547 = vdwg.mxu0
    %548 = vmatpush.msra.mxu0 0.0
    %549 = vmatpush.msra.mxu0 0.0
    %550 = vmatpush.msra.mxu0 0.0
    %551 = vmatpush.msra.mxu0 0.0
    %552 = vmatpush.msra.mxu0 0.0
    %553 = vmatpush.msra.mxu0 0.0
    %554 = vmatpush.msra.mxu0 0.0
    %555 = vmatpush.msra.mxu0 0.0
    %556 = vmatpush.msra.mxu0 0.0
    %557 = vmatpush.msra.mxu0 0.0
    %558 = vmatpush.msra.mxu0 0.0
    %559 = vmatpush.msra.mxu0 0.0
    %v560 = vand.u32 %v409, 4294901760
    %v561 = vsub.f32 %v409, %v560
    %v562 = vand.u32 %v561, 4294901760
    %563 = vmatpush.msra.mxu0 %v562
    %v564 = vand.u32 %v408, 4294901760
    %v565 = vsub.f32 %v408, %v564
    %v566 = vand.u32 %v565, 4294901760
    %567 = vmatpush.msra.mxu0 %v566
    %v568 = vand.u32 %v407, 4294901760
    %v569 = vsub.f32 %v407, %v568
    %v570 = vand.u32 %v569, 4294901760
    %571 = vmatpush.msra.mxu0 %v570
    %v572 = vand.u32 %v406, 4294901760
    %v573 = vsub.f32 %v406, %v572
    %v574 = vand.u32 %v573, 4294901760
    %575 = vmatpush.msra.mxu0 %v574
    %v576 = vand.u32 %v419, 4294901760
    %577 = vmatmul.f32.gmra.mxu0 %v576
    %v578 = vpop.f32.mrf.mxu0
    %v579 = vadd.f32 %v546, %v578
    %580 = vdwg.mxu0
    %581 = vmatpush.msra.mxu0 0.0
    %582 = vmatpush.msra.mxu0 0.0
    %583 = vmatpush.msra.mxu0 0.0
    %584 = vmatpush.msra.mxu0 0.0
    %585 = vmatpush.msra.mxu0 0.0
    %586 = vmatpush.msra.mxu0 0.0
    %587 = vmatpush.msra.mxu0 0.0
    %588 = vmatpush.msra.mxu0 0.0
    %589 = vmatpush.msra.mxu0 0.0
    %590 = vmatpush.msra.mxu0 0.0
    %591 = vmatpush.msra.mxu0 0.0
    %592 = vmatpush.msra.mxu0 0.0
    %v593 = vand.u32 %v409, 4294901760
    %594 = vmatpush.msra.mxu0 %v593
    %v595 = vand.u32 %v408, 4294901760
    %596 = vmatpush.msra.mxu0 %v595
    %v597 = vand.u32 %v407, 4294901760
    %598 = vmatpush.msra.mxu0 %v597
    %v599 = vand.u32 %v406, 4294901760
    %600 = vmatpush.msra.mxu0 %v599
    %v601 = vand.u32 %v419, 4294901760
    %602 = vmatmul.f32.gmra.mxu0 %v601
    %v603 = vpop.f32.mrf.mxu0
    %v604 = vadd.f32 %v579, %v603
    %605 = vdwg.mxu0
    %v606 = vmax.f32 %v604, 0.0
    %v607 = vld [vmem:[#allocation9] sm:$0xff]
    %v608 = vld [vmem:[#allocation9 + $0x8] sm:$0xff]
    %v609 = vld [vmem:[#allocation9 + $0x10] sm:$0xff]
    %v610 = vld [vmem:[#allocation9 + $0x18] sm:$0xff]
    %v611 = vld [vmem:[%s9] sm:$0x1]
    %v613 = vperm.slane %v611, 0
    %v616 = vsel %vm158, %v606, 0
    %618 = vmatpush.msra.mxu0 0.0
    %619 = vmatpush.msra.mxu0 0.0
    %620 = vmatpush.msra.mxu0 0.0
    %621 = vmatpush.msra.mxu0 0.0
    %622 = vmatpush.msra.mxu0 0.0
    %623 = vmatpush.msra.mxu0 0.0
    %624 = vmatpush.msra.mxu0 0.0
    %625 = vmatpush.msra.mxu0 0.0
    %626 = vmatpush.msra.mxu0 0.0
    %627 = vmatpush.msra.mxu0 0.0
    %628 = vmatpush.msra.mxu0 0.0
    %629 = vmatpush.msra.mxu0 0.0
    %v630 = vand.u32 %v610, 4294901760
    %631 = vmatpush.msra.mxu0 %v630
    %v632 = vand.u32 %v609, 4294901760
    %633 = vmatpush.msra.mxu0 %v632
    %v634 = vand.u32 %v608, 4294901760
    %635 = vmatpush.msra.mxu0 %v634
    %v636 = vand.u32 %v607, 4294901760
    %637 = vmatpush.msra.mxu0 %v636
    %v638 = vand.u32 %v616, 4294901760
    %v639 = vsub.f32 %v616, %v638
    %v640 = vand.u32 %v639, 4294901760
    %v641 = vsub.f32 %v639, %v640
    %v642 = vand.u32 %v641, 4294901760
    %643 = vmatmul.f32.gmra.mxu0 %v642
    %v644 = vpop.f32.mrf.mxu0
    %v645 = vadd.f32 %v613, %v644
    %646 = vdwg.mxu0
    %647 = vmatpush.msra.mxu0 0.0
    %648 = vmatpush.msra.mxu0 0.0
    %649 = vmatpush.msra.mxu0 0.0
    %650 = vmatpush.msra.mxu0 0.0
    %651 = vmatpush.msra.mxu0 0.0
    %652 = vmatpush.msra.mxu0 0.0
    %653 = vmatpush.msra.mxu0 0.0
    %654 = vmatpush.msra.mxu0 0.0
    %655 = vmatpush.msra.mxu0 0.0
    %656 = vmatpush.msra.mxu0 0.0
    %657 = vmatpush.msra.mxu0 0.0
    %658 = vmatpush.msra.mxu0 0.0
    %v659 = vand.u32 %v610, 4294901760
    %v660 = vsub.f32 %v610, %v659
    %v661 = vand.u32 %v660, 4294901760
    %v662 = vsub.f32 %v660, %v661
    %v663 = vand.u32 %v662, 4294901760
    %664 = vmatpush.msra.mxu0 %v663
    %v665 = vand.u32 %v609, 4294901760
    %v666 = vsub.f32 %v609, %v665
    %v667 = vand.u32 %v666, 4294901760
    %v668 = vsub.f32 %v666, %v667
    %v669 = vand.u32 %v668, 4294901760
    %670 = vmatpush.msra.mxu0 %v669
    %v671 = vand.u32 %v608, 4294901760
    %v672 = vsub.f32 %v608, %v671
    %v673 = vand.u32 %v672, 4294901760
    %v674 = vsub.f32 %v672, %v673
    %v675 = vand.u32 %v674, 4294901760
    %676 = vmatpush.msra.mxu0 %v675
    %v677 = vand.u32 %v607, 4294901760
    %v678 = vsub.f32 %v607, %v677
    %v679 = vand.u32 %v678, 4294901760
    %v680 = vsub.f32 %v678, %v679
    %v681 = vand.u32 %v680, 4294901760
    %682 = vmatpush.msra.mxu0 %v681
    %v683 = vand.u32 %v616, 4294901760
    %684 = vmatmul.f32.gmra.mxu0 %v683
    %v685 = vpop.f32.mrf.mxu0
    %v686 = vadd.f32 %v645, %v685
    %687 = vdwg.mxu0
    %688 = vmatpush.msra.mxu0 0.0
    %689 = vmatpush.msra.mxu0 0.0
    %690 = vmatpush.msra.mxu0 0.0
    %691 = vmatpush.msra.mxu0 0.0
    %692 = vmatpush.msra.mxu0 0.0
    %693 = vmatpush.msra.mxu0 0.0
    %694 = vmatpush.msra.mxu0 0.0
    %695 = vmatpush.msra.mxu0 0.0
    %696 = vmatpush.msra.mxu0 0.0
    %697 = vmatpush.msra.mxu0 0.0
    %698 = vmatpush.msra.mxu0 0.0
    %699 = vmatpush.msra.mxu0 0.0
    %v700 = vand.u32 %v610, 4294901760
    %v701 = vsub.f32 %v610, %v700
    %702 = vmatpush.msra.mxu0 %v701
    %v703 = vand.u32 %v609, 4294901760
    %v704 = vsub.f32 %v609, %v703
    %705 = vmatpush.msra.mxu0 %v704
    %v706 = vand.u32 %v608, 4294901760
    %v707 = vsub.f32 %v608, %v706
    %708 = vmatpush.msra.mxu0 %v707
    %v709 = vand.u32 %v607, 4294901760
    %v710 = vsub.f32 %v607, %v709
    %711 = vmatpush.msra.mxu0 %v710
    %v712 = vand.u32 %v616, 4294901760
    %v713 = vsub.f32 %v616, %v712
    %714 = vmatmul.f32.gmra.mxu0 %v713
    %v715 = vpop.f32.mrf.mxu0
    %v716 = vadd.f32 %v686, %v715
    %717 = vdwg.mxu0
    %718 = vmatpush.msra.mxu0 0.0
    %719 = vmatpush.msra.mxu0 0.0
    %720 = vmatpush.msra.mxu0 0.0
    %721 = vmatpush.msra.mxu0 0.0
    %722 = vmatpush.msra.mxu0 0.0
    %723 = vmatpush.msra.mxu0 0.0
    %724 = vmatpush.msra.mxu0 0.0
    %725 = vmatpush.msra.mxu0 0.0
    %726 = vmatpush.msra.mxu0 0.0
    %727 = vmatpush.msra.mxu0 0.0
    %728 = vmatpush.msra.mxu0 0.0
    %729 = vmatpush.msra.mxu0 0.0
    %v730 = vand.u32 %v610, 4294901760
    %731 = vmatpush.msra.mxu0 %v730
    %v732 = vand.u32 %v609, 4294901760
    %733 = vmatpush.msra.mxu0 %v732
    %v734 = vand.u32 %v608, 4294901760
    %735 = vmatpush.msra.mxu0 %v734
    %v736 = vand.u32 %v607, 4294901760
    %737 = vmatpush.msra.mxu0 %v736
    %v738 = vand.u32 %v616, 4294901760
    %v739 = vsub.f32 %v616, %v738
    %v740 = vand.u32 %v739, 4294901760
    %741 = vmatmul.f32.gmra.mxu0 %v740
    %v742 = vpop.f32.mrf.mxu0
    %v743 = vadd.f32 %v716, %v742
    %744 = vdwg.mxu0
    %745 = vmatpush.msra.mxu0 0.0
    %746 = vmatpush.msra.mxu0 0.0
    %747 = vmatpush.msra.mxu0 0.0
    %748 = vmatpush.msra.mxu0 0.0
    %749 = vmatpush.msra.mxu0 0.0
    %750 = vmatpush.msra.mxu0 0.0
    %751 = vmatpush.msra.mxu0 0.0
    %752 = vmatpush.msra.mxu0 0.0
    %753 = vmatpush.msra.mxu0 0.0
    %754 = vmatpush.msra.mxu0 0.0
    %755 = vmatpush.msra.mxu0 0.0
    %756 = vmatpush.msra.mxu0 0.0
    %v757 = vand.u32 %v610, 4294901760
    %v758 = vsub.f32 %v610, %v757
    %v759 = vand.u32 %v758, 4294901760
    %760 = vmatpush.msra.mxu0 %v759
    %v761 = vand.u32 %v609, 4294901760
    %v762 = vsub.f32 %v609, %v761
    %v763 = vand.u32 %v762, 4294901760
    %764 = vmatpush.msra.mxu0 %v763
    %v765 = vand.u32 %v608, 4294901760
    %v766 = vsub.f32 %v608, %v765
    %v767 = vand.u32 %v766, 4294901760
    %768 = vmatpush.msra.mxu0 %v767
    %v769 = vand.u32 %v607, 4294901760
    %v770 = vsub.f32 %v607, %v769
    %v771 = vand.u32 %v770, 4294901760
    %772 = vmatpush.msra.mxu0 %v771
    %v773 = vand.u32 %v616, 4294901760
    %774 = vmatmul.f32.gmra.mxu0 %v773
    %v775 = vpop.f32.mrf.mxu0
    %v776 = vadd.f32 %v743, %v775
    %777 = vdwg.mxu0
    %778 = vmatpush.msra.mxu0 0.0
    %779 = vmatpush.msra.mxu0 0.0
    %780 = vmatpush.msra.mxu0 0.0
    %781 = vmatpush.msra.mxu0 0.0
    %782 = vmatpush.msra.mxu0 0.0
    %783 = vmatpush.msra.mxu0 0.0
    %784 = vmatpush.msra.mxu0 0.0
    %785 = vmatpush.msra.mxu0 0.0
    %786 = vmatpush.msra.mxu0 0.0
    %787 = vmatpush.msra.mxu0 0.0
    %788 = vmatpush.msra.mxu0 0.0
    %789 = vmatpush.msra.mxu0 0.0
    %v790 = vand.u32 %v610, 4294901760
    %791 = vmatpush.msra.mxu0 %v790
    %v792 = vand.u32 %v609, 4294901760
    %793 = vmatpush.msra.mxu0 %v792
    %v794 = vand.u32 %v608, 4294901760
    %795 = vmatpush.msra.mxu0 %v794
    %v796 = vand.u32 %v607, 4294901760
    %797 = vmatpush.msra.mxu0 %v796
    %v798 = vand.u32 %v616, 4294901760
    %799 = vmatmul.f32.gmra.mxu0 %v798
    %v800 = vpop.f32.mrf.mxu0
    %v801 = vadd.f32 %v776, %v800
    %802 = vdwg.mxu0
    %v803 = vmax.f32 %v801, 0.0
    %v804 = vld [vmem:[#allocation11] sm:$0xff]
    %v805 = vld [vmem:[#allocation11 + $0x8] sm:$0xff]
    %v806 = vld [vmem:[#allocation11 + $0x10] sm:$0xff]
    %v807 = vld [vmem:[#allocation11 + $0x18] sm:$0xff]
    %v808 = vld [vmem:[%s11] sm:$0x1]
    %v810 = vperm.slane %v808, 0
    %v813 = vsel %vm158, %v803, 0
    %815 = vmatpush.msra.mxu0 0.0
    %816 = vmatpush.msra.mxu0 0.0
    %817 = vmatpush.msra.mxu0 0.0
    %818 = vmatpush.msra.mxu0 0.0
    %819 = vmatpush.msra.mxu0 0.0
    %820 = vmatpush.msra.mxu0 0.0
    %821 = vmatpush.msra.mxu0 0.0
    %822 = vmatpush.msra.mxu0 0.0
    %823 = vmatpush.msra.mxu0 0.0
    %824 = vmatpush.msra.mxu0 0.0
    %825 = vmatpush.msra.mxu0 0.0
    %826 = vmatpush.msra.mxu0 0.0
    %v827 = vand.u32 %v807, 4294901760
    %828 = vmatpush.msra.mxu0 %v827
    %v829 = vand.u32 %v806, 4294901760
    %830 = vmatpush.msra.mxu0 %v829
    %v831 = vand.u32 %v805, 4294901760
    %832 = vmatpush.msra.mxu0 %v831
    %v833 = vand.u32 %v804, 4294901760
    %834 = vmatpush.msra.mxu0 %v833
    %v835 = vand.u32 %v813, 4294901760
    %v836 = vsub.f32 %v813, %v835
    %v837 = vand.u32 %v836, 4294901760
    %v838 = vsub.f32 %v836, %v837
    %v839 = vand.u32 %v838, 4294901760
    %840 = vmatmul.f32.gmra.mxu0 %v839
    %v841 = vpop.f32.mrf.mxu0
    %v842 = vadd.f32 %v810, %v841
    %843 = vdwg.mxu0
    %844 = vmatpush.msra.mxu0 0.0
    %845 = vmatpush.msra.mxu0 0.0
    %846 = vmatpush.msra.mxu0 0.0
    %847 = vmatpush.msra.mxu0 0.0
    %848 = vmatpush.msra.mxu0 0.0
    %849 = vmatpush.msra.mxu0 0.0
    %850 = vmatpush.msra.mxu0 0.0
    %851 = vmatpush.msra.mxu0 0.0
    %852 = vmatpush.msra.mxu0 0.0
    %853 = vmatpush.msra.mxu0 0.0
    %854 = vmatpush.msra.mxu0 0.0
    %855 = vmatpush.msra.mxu0 0.0
    %v856 = vand.u32 %v807, 4294901760
    %v857 = vsub.f32 %v807, %v856
    %v858 = vand.u32 %v857, 4294901760
    %v859 = vsub.f32 %v857, %v858
    %v860 = vand.u32 %v859, 4294901760
    %861 = vmatpush.msra.mxu0 %v860
    %v862 = vand.u32 %v806, 4294901760
    %v863 = vsub.f32 %v806, %v862
    %v864 = vand.u32 %v863, 4294901760
    %v865 = vsub.f32 %v863, %v864
    %v866 = vand.u32 %v865, 4294901760
    %867 = vmatpush.msra.mxu0 %v866
    %v868 = vand.u32 %v805, 4294901760
    %v869 = vsub.f32 %v805, %v868
    %v870 = vand.u32 %v869, 4294901760
    %v871 = vsub.f32 %v869, %v870
    %v872 = vand.u32 %v871, 4294901760
    %873 = vmatpush.msra.mxu0 %v872
    %v874 = vand.u32 %v804, 4294901760
    %v875 = vsub.f32 %v804, %v874
    %v876 = vand.u32 %v875, 4294901760
    %v877 = vsub.f32 %v875, %v876
    %v878 = vand.u32 %v877, 4294901760
    %879 = vmatpush.msra.mxu0 %v878
    %v880 = vand.u32 %v813, 4294901760
    %881 = vmatmul.f32.gmra.mxu0 %v880
    %v882 = vpop.f32.mrf.mxu0
    %v883 = vadd.f32 %v842, %v882
    %884 = vdwg.mxu0
    %885 = vmatpush.msra.mxu0 0.0
    %886 = vmatpush.msra.mxu0 0.0
    %887 = vmatpush.msra.mxu0 0.0
    %888 = vmatpush.msra.mxu0 0.0
    %889 = vmatpush.msra.mxu0 0.0
    %890 = vmatpush.msra.mxu0 0.0
    %891 = vmatpush.msra.mxu0 0.0
    %892 = vmatpush.msra.mxu0 0.0
    %893 = vmatpush.msra.mxu0 0.0
    %894 = vmatpush.msra.mxu0 0.0
    %895 = vmatpush.msra.mxu0 0.0
    %896 = vmatpush.msra.mxu0 0.0
    %v897 = vand.u32 %v807, 4294901760
    %v898 = vsub.f32 %v807, %v897
    %899 = vmatpush.msra.mxu0 %v898
    %v900 = vand.u32 %v806, 4294901760
    %v901 = vsub.f32 %v806, %v900
    %902 = vmatpush.msra.mxu0 %v901
    %v903 = vand.u32 %v805, 4294901760
    %v904 = vsub.f32 %v805, %v903
    %905 = vmatpush.msra.mxu0 %v904
    %v906 = vand.u32 %v804, 4294901760
    %v907 = vsub.f32 %v804, %v906
    %908 = vmatpush.msra.mxu0 %v907
    %v909 = vand.u32 %v813, 4294901760
    %v910 = vsub.f32 %v813, %v909
    %911 = vmatmul.f32.gmra.mxu0 %v910
    %v912 = vpop.f32.mrf.mxu0
    %v913 = vadd.f32 %v883, %v912
    %914 = vdwg.mxu0
    %915 = vmatpush.msra.mxu0 0.0
    %916 = vmatpush.msra.mxu0 0.0
    %917 = vmatpush.msra.mxu0 0.0
    %918 = vmatpush.msra.mxu0 0.0
    %919 = vmatpush.msra.mxu0 0.0
    %920 = vmatpush.msra.mxu0 0.0
    %921 = vmatpush.msra.mxu0 0.0
    %922 = vmatpush.msra.mxu0 0.0
    %923 = vmatpush.msra.mxu0 0.0
    %924 = vmatpush.msra.mxu0 0.0
    %925 = vmatpush.msra.mxu0 0.0
    %926 = vmatpush.msra.mxu0 0.0
    %v927 = vand.u32 %v807, 4294901760
    %928 = vmatpush.msra.mxu0 %v927
    %v929 = vand.u32 %v806, 4294901760
    %930 = vmatpush.msra.mxu0 %v929
    %v931 = vand.u32 %v805, 4294901760
    %932 = vmatpush.msra.mxu0 %v931
    %v933 = vand.u32 %v804, 4294901760
    %934 = vmatpush.msra.mxu0 %v933
    %v935 = vand.u32 %v813, 4294901760
    %v936 = vsub.f32 %v813, %v935
    %v937 = vand.u32 %v936, 4294901760
    %938 = vmatmul.f32.gmra.mxu0 %v937
    %v939 = vpop.f32.mrf.mxu0
    %v940 = vadd.f32 %v913, %v939
    %941 = vdwg.mxu0
    %942 = vmatpush.msra.mxu0 0.0
    %943 = vmatpush.msra.mxu0 0.0
    %944 = vmatpush.msra.mxu0 0.0
    %945 = vmatpush.msra.mxu0 0.0
    %946 = vmatpush.msra.mxu0 0.0
    %947 = vmatpush.msra.mxu0 0.0
    %948 = vmatpush.msra.mxu0 0.0
    %949 = vmatpush.msra.mxu0 0.0
    %950 = vmatpush.msra.mxu0 0.0
    %951 = vmatpush.msra.mxu0 0.0
    %952 = vmatpush.msra.mxu0 0.0
    %953 = vmatpush.msra.mxu0 0.0
    %v954 = vand.u32 %v807, 4294901760
    %v955 = vsub.f32 %v807, %v954
    %v956 = vand.u32 %v955, 4294901760
    %957 = vmatpush.msra.mxu0 %v956
    %v958 = vand.u32 %v806, 4294901760
    %v959 = vsub.f32 %v806, %v958
    %v960 = vand.u32 %v959, 4294901760
    %961 = vmatpush.msra.mxu0 %v960
    %v962 = vand.u32 %v805, 4294901760
    %v963 = vsub.f32 %v805, %v962
    %v964 = vand.u32 %v963, 4294901760
    %965 = vmatpush.msra.mxu0 %v964
    %v966 = vand.u32 %v804, 4294901760
    %v967 = vsub.f32 %v804, %v966
    %v968 = vand.u32 %v967, 4294901760
    %969 = vmatpush.msra.mxu0 %v968
    %v970 = vand.u32 %v813, 4294901760
    %971 = vmatmul.f32.gmra.mxu0 %v970
    %v972 = vpop.f32.mrf.mxu0
    %v973 = vadd.f32 %v940, %v972
    %974 = vdwg.mxu0
    %975 = vmatpush.msra.mxu0 0.0
    %976 = vmatpush.msra.mxu0 0.0
    %977 = vmatpush.msra.mxu0 0.0
    %978 = vmatpush.msra.mxu0 0.0
    %979 = vmatpush.msra.mxu0 0.0
    %980 = vmatpush.msra.mxu0 0.0
    %981 = vmatpush.msra.mxu0 0.0
    %982 = vmatpush.msra.mxu0 0.0
    %983 = vmatpush.msra.mxu0 0.0
    %984 = vmatpush.msra.mxu0 0.0
    %985 = vmatpush.msra.mxu0 0.0
    %986 = vmatpush.msra.mxu0 0.0
    %v987 = vand.u32 %v807, 4294901760
    %988 = vmatpush.msra.mxu0 %v987
    %v989 = vand.u32 %v806, 4294901760
    %990 = vmatpush.msra.mxu0 %v989
    %v991 = vand.u32 %v805, 4294901760
    %992 = vmatpush.msra.mxu0 %v991
    %v993 = vand.u32 %v804, 4294901760
    %994 = vmatpush.msra.mxu0 %v993
    %v995 = vand.u32 %v813, 4294901760
    %996 = vmatmul.f32.gmra.mxu0 %v995
    %v997 = vpop.f32.mrf.mxu0
    %v998 = vadd.f32 %v973, %v997
    %999 = vdwg.mxu0
    %vm1000 = vcmask 254976
    %1001 = vst.msk [vmem:[#allocation12] sm:$0x3] %vm1000, %v998
    // Predicated region
    $region70: #{tpu_custom_call.1} parent=1 // pred_check
      _
    $region71: #{tpu_custom_call.1} parent=1 // pred_check_branch
      %1003 = sbr.rel (0) target = $region73
    $region72: #{tpu_custom_call.1} parent=1 // pred_region
      %1005 = vsyncadd [#allocation5], 0
      %s1007 = sshll.u32 [#allocation12], 4
      %s1008 = int_to_ptr.vmem [resolvable:$true] %s1007
      %s1009 = sshll.u32 %s12, 4
      %s1010 = int_to_ptr.hbm [resolvable:$true] %s1009
      %1012 = dma.vmem_to_hbm [thread:$0]  %s1008, 32, %s1010, [#allocation5]
    $region73: #{tpu_custom_call.1} parent=1 // pred_fallthru
      _
    // Predicated region
    $region74: #{tpu_custom_call.1} parent=1 // pred_check
      _
    $region75: #{tpu_custom_call.1} parent=1 // pred_check_branch
      %1014 = sbr.rel (0) target = $region77
    $region76: #{tpu_custom_call.1} parent=1 // pred_region
      %1016 = dma.done [#allocation5], 32
    $region77: #{tpu_custom_call.1} parent=1 // pred_fallthru
      _
    %1017 = vsyncpa [#allocation4], 1
    %1018 = vsyncpa [#allocation7], 1
    %1019 = vsyncpa [#allocation10], 1
    %1020 = vsyncpa [#allocation5], 1

</llo_original>
